<compile_context>
chip_gen: v7x
topology: tpu7x:2x2x1
jax: 0.10.0
libtpu: 0.0.40
codegen_flags: <defaults>
</compile_context>

<pallas_src>
import functools

import jax
import jax.numpy as jnp
from jax.experimental import pallas as pl
from jax.experimental.pallas import tpu as pltpu


def _round_up(x, m):
    return ((x + m - 1) // m) * m


# ----------------------------------------------------------------------------
# Pallas kernel: one grid point = (batch block, vocab tile).
# ----------------------------------------------------------------------------
def decoder_lstm_kernel(x_ref, wih_ref, whh_ref, b_ref, wout_ref, bout_ref,
                        out_ref, gates_scr, hall_scr, hbm_scr, *, T, Bpc):
    """Fused DecoderRNN forward.

    x_ref     : (T*Bpc, E)  time-major within the batch block (row = t*Bpc + b)
    wih_ref   : (E, 4H)     MXU dtype
    whh_ref   : (H, 4H)     MXU dtype
    b_ref     : (1, 4H)     f32 (b_ih + b_hh)
    wout_ref  : (H, tv)     MXU dtype, current vocab tile
    bout_ref  : (1, tv)     f32,       current vocab tile
    out_ref   : (Bpc*T, tv) f32, batch-major rows (row = b*T + t)
    gates_scr : (T*Bpc, 4H) f32 scratch, precomputed input-gate projections
    hall_scr  : (T, Bpc, H) f32 scratch, hidden states (time-major)
    hbm_scr   : (Bpc*T, H)  MXU-dtype scratch, hidden states (batch-major)
    """
    H = whh_ref.shape[0]
    G = 4 * H
    mxu_dtype = wih_ref.dtype
    j = pl.program_id(1)                      # vocab-tile index (inner axis)

    # ---- Phases 1-2: once per batch block (first vocab tile only). ---------
    @pl.when(j == 0)
    def _input_proj_and_recurrence():
        # Phase 1: input projection for ALL timesteps in ONE MXU matmul; bias
        # folded in so the recurrent loop only adds h @ W_hh^T.
        gates_scr[...] = (
            jnp.dot(x_ref[...], wih_ref[...],
                    preferred_element_type=jnp.float32)
            + b_ref[...])

        whh = whh_ref[...]                    # hoist weight load out of loop
        # Lane mask selecting the g-gate quarter of the [i|f|g|o] layout,
        # hoisted so each step needs only full-vreg sigmoid + tanh pushes.
        lane = jax.lax.broadcasted_iota(jnp.int32, (Bpc, G), 1)
        g_mask = (lane >= 2 * H) & (lane < 3 * H)

        # Phase 2: sequential recurrence (the only non-parallel part).
        # h / c carries stay f32; only the MXU operand is cast.
        # NOTE(perf): with H=32 the gate slices land at lane offsets 32/64/96
        # of one 128-lane vreg; real models should pick H as a multiple of 128.
        # TODO(synk): for Bpc >= 16, interleave two independent Bpc/2 halves of
        # the recurrence to hide MXU/EUP FIFO latency under the other half's
        # VPU gate math.
        def step(t, carry):
            h, c = carry
            row = pl.multiple_of(t * Bpc, 8)          # aligned sublane slice
            gates = gates_scr[pl.ds(row, Bpc), :] + jnp.dot(
                h.astype(mxu_dtype), whh, preferred_element_type=jnp.float32)
            sig = jax.nn.sigmoid(gates)               # 1 full-vreg EUP push
            tnh = jnp.tanh(gates)                     # 1 full-vreg EUP push
            act = jnp.where(g_mask, tnh, sig)         # [i | f | tanh(g) | o]
            i_g = act[:, 0 * H:1 * H]
            f_g = act[:, 1 * H:2 * H]
            g_g = act[:, 2 * H:3 * H]
            o_g = act[:, 3 * H:4 * H]
            c_new = f_g * c + i_g * g_g
            h_new = o_g * jnp.tanh(c_new)             # 3rd (last) EUP push
            hall_scr[t] = h_new                       # off the carry chain
            return h_new, c_new

        h0 = jnp.zeros((Bpc, H), jnp.float32)
        c0 = jnp.zeros((Bpc, H), jnp.float32)
        # T is small and static -> full unroll gives the LLO scheduler visibility.
        jax.lax.fori_loop(0, T, step, (h0, c0), unroll=True)

        # Repack hidden states to batch-major (and MXU dtype) ONCE per batch
        # block, off the per-vocab-tile path: Bpc small copies (strided read,
        # contiguous aligned store).  For large Bpc this could be a single
        # relayout (e.g. pltpu.einshape) instead of a static loop.
        for b in range(Bpc):
            hbm_scr[pl.ds(b * T, T), :] = hall_scr[:, b, :].astype(hbm_scr.dtype)

    # ---- Phase 3: hidden2tag for the current vocab tile. --------------------
    # ONE (Bpc*T, H) @ (H, tv) MXU matmul; whole batch-major slab written as a
    # single unmasked lane-dense store.
    out_ref[...] = (
        jnp.dot(hbm_scr[...], wout_ref[...],
                preferred_element_type=jnp.float32)
        + bout_ref[...])


# ----------------------------------------------------------------------------
# Wrapper: embedding gather + concat (glue) in plain JAX, everything else in
# the Pallas kernel.  No activation transposes in the wrapper.
# ----------------------------------------------------------------------------
def decoder_rnn_forward(features, captions, params, *, mxu_dtype=jnp.bfloat16,
                        batch_block=8, vocab_tile=512):
    """Pallas implementation of DecoderRNN.forward.

    features: (B, E) float32
    captions: (B, L) int32
    returns:  (B, L, V) float32, batch_first (same as the PyTorch module)

    mxu_dtype  : dtype of the operands fed to the MXU (weights + activations).
                 bf16 by default on ALL generations (v5e/v6e/v7x MXUs are
                 natively bf16); accumulation, the h/c carries and all gate
                 math stay float32.  Pass jnp.float32 for a bit-tighter check.
    batch_block: padded-batch rows handled per grid step (multiple of 8);
                 larger B -> several blocks -> the "parallel" axis uses both
                 v7x TensorCores.
    vocab_tile : vocab tile width (multiple of 128); W_out / b_out / out are
                 streamed (double-buffered) over this axis.
    """
    embedding = params["embedding"]        # (V, E)
    w_ih = params["w_ih"]                  # (4H, E)  PyTorch convention
    w_hh = params["w_hh"]                  # (4H, H)
    b_ih = params["b_ih"]                  # (4H,)
    b_hh = params["b_hh"]                  # (4H,)
    w_out = params["w_out"]                # (V, H)
    b_out = params["b_out"]                # (V,)

    B, E = features.shape
    H = w_hh.shape[1]
    V = embedding.shape[0]
    G = 4 * H

    # Build the LSTM input time-major WITHOUT transposing activations: gather
    # with transposed caption ids (tiny int32 matrix) + stack the image step.
    # NOTE: jnp.take clamps out-of-range ids (PyTorch nn.Embedding would raise);
    # caption ids are assumed to lie in [0, V).
    cap_ids_tm = captions[:, :-1].T                               # (L-1, B)
    embeds_tm = jnp.take(embedding, cap_ids_tm, axis=0)           # (L-1, B, E)
    x_tm = jnp.concatenate([features[None, :, :], embeds_tm], axis=0)  # (T,B,E)
    T = x_tm.shape[0]

    # Batch: pad to whole sublane-aligned batch blocks (unmasked rows/stores).
    Bpc = max(8, _round_up(batch_block, 8))
    Bp = max(Bpc, _round_up(B, Bpc))
    nb = Bp // Bpc
    if Bp != B:
        x_tm = jnp.pad(x_tm, ((0, 0), (0, Bp - B), (0, 0)))

    # Per-block, time-major-flattened input: (nb, T*Bpc, E), row = t*Bpc + b.
    x_blk = (x_tm.reshape(T, nb, Bpc, E).transpose(1, 0, 2, 3)
             .reshape(nb, T * Bpc, E).astype(mxu_dtype))

    # Vocab: pad to a whole number of lane-dense (multiple-of-128) tiles.
    tv = max(128, _round_up(min(vocab_tile, _round_up(V, 128)), 128))
    Vp = _round_up(V, tv)
    nv = Vp // tv

    # One-time, parameter-sized weight prep: transpose so the kernel does plain
    # row-major matmuls; cast MXU operands once (halves their DMA when bf16).
    w_ih_t = jnp.transpose(w_ih).astype(mxu_dtype)                # (E, 4H)
    w_hh_t = jnp.transpose(w_hh).astype(mxu_dtype)                # (H, 4H)
    bias = (b_ih + b_hh).reshape(1, G).astype(jnp.float32)        # (1, 4H)
    w_out_t = jnp.transpose(
        jnp.pad(w_out, ((0, Vp - V), (0, 0)))).astype(mxu_dtype)  # (H, Vp)
    b_out_2d = jnp.pad(b_out, (0, Vp - V)).reshape(1, Vp).astype(jnp.float32)

    # Explicit VMEM budget (double-buffered tiles + persistent scratch), capped
    # below v7x's 64 MiB physical VMEM.
    # TODO(synk): at long T / large Bpc, additionally chunk phase 1 over T so
    # gates_scr does not grow linearly with the sequence length.
    mxu_bytes = jnp.dtype(mxu_dtype).itemsize
    vmem_est = (2 * (T * Bpc * E + E * G + H * G + H * tv) * mxu_bytes
                + 2 * (G + tv + Bpc * T * tv) * 4
                + (T * Bpc * G + T * Bpc * H) * 4
                + Bpc * T * H * mxu_bytes)
    vmem_limit = int(min(60 * 1024 * 1024,
                         max(16 * 1024 * 1024, 2 * vmem_est)))

    kernel = functools.partial(decoder_lstm_kernel, T=T, Bpc=Bpc)

    grid_spec = pltpu.PrefetchScalarGridSpec(
        num_scalar_prefetch=0,
        grid=(nb, nv),                       # (batch blocks, vocab tiles)
        in_specs=[
            pl.BlockSpec((None, T * Bpc, E), lambda bi, j: (bi, 0, 0)),  # x
            pl.BlockSpec((E, G), lambda bi, j: (0, 0)),                  # W_ih^T
            pl.BlockSpec((H, G), lambda bi, j: (0, 0)),                  # W_hh^T
            pl.BlockSpec((1, G), lambda bi, j: (0, 0)),                  # bias
            pl.BlockSpec((H, tv), lambda bi, j: (0, j)),                 # W_out^T
            pl.BlockSpec((1, tv), lambda bi, j: (0, j)),                 # b_out
        ],
        out_specs=pl.BlockSpec((None, Bpc * T, tv), lambda bi, j: (bi, 0, j)),
        scratch_shapes=[
            pltpu.VMEM((T * Bpc, G), jnp.float32),   # precomputed input gates
            pltpu.VMEM((T, Bpc, H), jnp.float32),    # hidden states, time-major
            pltpu.VMEM((Bpc * T, H), mxu_dtype),     # hidden states, batch-major
        ],
    )

    out = pl.pallas_call(
        kernel,
        out_shape=jax.ShapeDtypeStruct((nb, Bpc * T, Vp), jnp.float32),
        grid_spec=grid_spec,
        compiler_params=pltpu.CompilerParams(
            dimension_semantics=("parallel", "arbitrary"),
            vmem_limit_bytes=vmem_limit),
    )(x_blk, w_ih_t, w_hh_t, bias, w_out_t, b_out_2d)

    # Rows inside each block are already batch-major (row = b*T + t), so this
    # is a pure reshape; then drop batch / vocab padding.
    return out.reshape(Bp, T, Vp)[:B, :, :V]


# ----------------------------------------------------------------------------
# Pure-JAX reference (HIGHEST matmul precision) for the correctness check.
# ----------------------------------------------------------------------------
def reference_forward(features, captions, params):
    hp = jax.lax.Precision.HIGHEST
    embedding = params["embedding"]
    w_ih, w_hh = params["w_ih"], params["w_hh"]
    b_ih, b_hh = params["b_ih"], params["b_hh"]
    w_out, b_out = params["w_out"], params["b_out"]

    embeds = jnp.take(embedding, captions[:, :-1], axis=0)
    x = jnp.concatenate([features[:, None, :], embeds], axis=1)
    B = x.shape[0]
    H = w_hh.shape[1]

    def step(carry, xt):
        h, c = carry
        gates = (jnp.dot(xt, w_ih.T, precision=hp) + b_ih
                 + jnp.dot(h, w_hh.T, precision=hp) + b_hh)
        i_g = jax.nn.sigmoid(gates[:, 0 * H:1 * H])
        f_g = jax.nn.sigmoid(gates[:, 1 * H:2 * H])
        g_g = jnp.tanh(gates[:, 2 * H:3 * H])
        o_g = jax.nn.sigmoid(gates[:, 3 * H:4 * H])
        c_new = f_g * c + i_g * g_g
        h_new = o_g * jnp.tanh(c_new)
        return (h_new, c_new), h_new

    h0 = jnp.zeros((B, H), jnp.float32)
    c0 = jnp.zeros((B, H), jnp.float32)
    (_, _), hs = jax.lax.scan(step, (h0, c0), jnp.transpose(x, (1, 0, 2)))
    lstm_out = jnp.transpose(hs, (1, 0, 2))                      # (B, T, H)
    return jnp.dot(lstm_out, w_out.T, precision=hp) + b_out      # (B, T, V)


if __name__ == "__main__":
    # Small shapes consistent with DecoderRNN(embed_size, hidden_size, vocab_size)
    B = 2          # batch
    E = 32         # embed_size
    H = 32         # hidden_size
    V = 128        # vocab_size
    L = 8          # caption length  ->  LSTM sequence length T = L

    key = jax.random.PRNGKey(0)
    k_emb, k_wih, k_whh, k_bih, k_bhh, k_wo, k_bo, k_feat, k_cap = \
        jax.random.split(key, 9)

    params = {
        "embedding": 0.1 * jax.random.normal(k_emb, (V, E), jnp.float32),
        "w_ih": 0.1 * jax.random.normal(k_wih, (4 * H, E), jnp.float32),
        "w_hh": 0.1 * jax.random.normal(k_whh, (4 * H, H), jnp.float32),
        "b_ih": 0.1 * jax.random.normal(k_bih, (4 * H,), jnp.float32),
        "b_hh": 0.1 * jax.random.normal(k_bhh, (4 * H,), jnp.float32),
        "w_out": 0.1 * jax.random.normal(k_wo, (V, H), jnp.float32),
        "b_out": 0.1 * jax.random.normal(k_bo, (V,), jnp.float32),
    }

    features = jax.random.normal(k_feat, (B, E), jnp.float32)
    captions = jax.random.randint(k_cap, (B, L), 0, V, jnp.int32)

    ref = reference_forward(features, captions, params)

    # f32 MXU-operand path: tight check against the HIGHEST-precision reference.
    out_f32 = decoder_rnn_forward(features, captions, params,
                                  mxu_dtype=jnp.float32)
    out_f32 = jax.block_until_ready(out_f32)
    assert out_f32.shape == (B, L, V), out_f32.shape
    assert jnp.allclose(out_f32, ref, atol=1e-4, rtol=1e-4), \
        float(jnp.max(jnp.abs(out_f32 - ref)))

    # Default path: bf16 MXU operands on all generations; accumulation, h/c
    # carries and gate math stay f32 -> only matmul-operand rounding differs.
    out_bf16 = decoder_rnn_forward(features, captions, params)
    out_bf16 = jax.block_until_ready(out_bf16)
    assert out_bf16.shape == (B, L, V), out_bf16.shape
    bf16_err = float(jnp.max(jnp.abs(out_bf16 - ref)))
    assert bf16_err < 5e-2, bf16_err

    print("KERNEL_OK")
</pallas_src>

<mosaic_0001>
module attributes {stable_mosaic.version = 11 : i64} {
  func.func @decoder_lstm_kernel(%arg0: i32, %arg1: i32, %arg2: memref<1x64x32xf32, #tpu.memory_space<vmem>>, %arg3: memref<32x128xf32, #tpu.memory_space<vmem>>, %arg4: memref<32x128xf32, #tpu.memory_space<vmem>>, %arg5: memref<1x128xf32, #tpu.memory_space<vmem>>, %arg6: memref<32x128xf32, #tpu.memory_space<vmem>>, %arg7: memref<1x128xf32, #tpu.memory_space<vmem>>, %arg8: memref<1x64x128xf32, #tpu.memory_space<vmem>>, %arg9: memref<64x128xf32, #tpu.memory_space<vmem>>, %arg10: memref<8x8x32xf32, #tpu.memory_space<vmem>>, %arg11: memref<64x32xf32, #tpu.memory_space<vmem>>) attributes {dimension_semantics = [#tpu.dimension_semantics<parallel>, #tpu.dimension_semantics<arbitrary>], iteration_bounds = array<i64: 1, 1>, scalar_prefetch = 0 : i64, scratch_operands = 3 : i64, tpu.core_type = #tpu.core_type<tc>, window_params = [{transform_indices = @transform_0, window_bounds = array<i64: 1, 64, 32>}, {pipeline_mode = #tpu.pipeline_mode<synchronous>, transform_indices = @transform_1, window_bounds = array<i64: 32, 128>}, {pipeline_mode = #tpu.pipeline_mode<synchronous>, transform_indices = @transform_2, window_bounds = array<i64: 32, 128>}, {pipeline_mode = #tpu.pipeline_mode<synchronous>, transform_indices = @transform_3, window_bounds = array<i64: 1, 128>}, {transform_indices = @transform_4, window_bounds = array<i64: 32, 128>}, {transform_indices = @transform_5, window_bounds = array<i64: 1, 128>}, {transform_indices = @transform_6, window_bounds = array<i64: 1, 64, 128>}]} {
    %c0_i32 = arith.constant 0 : i32
    %0 = arith.cmpi eq, %arg1, %c0_i32 : i32
    %1 = arith.extui %0 : i1 to i32
    %c0_i32_0 = arith.constant 0 : i32
    %2 = arith.cmpi ne, %1, %c0_i32_0 : i32
    scf.if %2 {
      %c0_9 = arith.constant 0 : index
      %c0_10 = arith.constant 0 : index
      %c0_11 = arith.constant 0 : index
      %12 = vector.load %arg2[%c0_9, %c0_10, %c0_11] : memref<1x64x32xf32, #tpu.memory_space<vmem>>, vector<1x64x32xf32>
      %13 = vector.shape_cast %12 : vector<1x64x32xf32> to vector<64x32xf32>
      %c0_12 = arith.constant 0 : index
      %c0_13 = arith.constant 0 : index
      %14 = vector.load %arg3[%c0_12, %c0_13] : memref<32x128xf32, #tpu.memory_space<vmem>>, vector<32x128xf32>
      %cst_14 = arith.constant dense<0.000000e+00> : vector<64x128xf32>
      %15 = tpu.matmul %13, %14, %cst_14 {dimension_numbers = #tpu.dot_dimension_numbers<[1], [0], [0], [1], [0, 0, 1, 1], [], []>} : vector<64x32xf32>, vector<32x128xf32>, vector<64x128xf32> -> vector<64x128xf32>
      %c0_15 = arith.constant 0 : index
      %c0_16 = arith.constant 0 : index
      %16 = vector.load %arg5[%c0_15, %c0_16] : memref<1x128xf32, #tpu.memory_space<vmem>>, vector<1x128xf32>
      %17 = vector.broadcast %16 : vector<1x128xf32> to vector<64x128xf32>
      %18 = arith.addf %15, %17 : vector<64x128xf32>
      %c0_17 = arith.constant 0 : index
      %c0_18 = arith.constant 0 : index
      %19 = vector.load %arg9[%c0_17, %c0_18] : memref<64x128xf32, #tpu.memory_space<vmem>>, vector<64x128xf32>
      tpu.vector_store %arg9[%c0_17, %c0_18], %18 {strides = array<i32>} : memref<64x128xf32, #tpu.memory_space<vmem>>, vector<64x128xf32>,
      %c0_19 = arith.constant 0 : index
      %c0_20 = arith.constant 0 : index
      %20 = vector.load %arg4[%c0_19, %c0_20] : memref<32x128xf32, #tpu.memory_space<vmem>>, vector<32x128xf32>
      %21 = tpu.iota {dimensions = array<i32: 1>} : vector<8x128xi32>
      %c64_i32 = arith.constant 64 : i32
      %22 = vector.broadcast %c64_i32 : i32 to vector<8x128xi32>
      %23 = arith.cmpi sge, %21, %22 : vector<8x128xi32>
      %c96_i32 = arith.constant 96 : i32
      %24 = vector.broadcast %c96_i32 : i32 to vector<8x128xi32>
      %25 = arith.cmpi slt, %21, %24 : vector<8x128xi32>
      %26 = arith.andi %23, %25 : vector<8x128xi1>
      %cst_21 = arith.constant 0.000000e+00 : f32
      %27 = vector.broadcast %cst_21 : f32 to vector<8x32xf32>
      %cst_22 = arith.constant 0.000000e+00 : f32
      %28 = vector.broadcast %cst_22 : f32 to vector<8x32xf32>
      %c0_i32_23 = arith.constant 0 : i32
      %c8_i32 = arith.constant 8 : i32
      %29 = arith.muli %c0_i32_23, %c8_i32 : i32
      %30 = tpu.assume_multiple %29, 8 : i32
      %31 = arith.index_cast %30 : i32 to index
      %c0_24 = arith.constant 0 : index
      %32 = vector.load %arg9[%31, %c0_24] : memref<64x128xf32, #tpu.memory_space<vmem>>, vector<8x128xf32>
      %cst_25 = arith.constant dense<0.000000e+00> : vector<8x128xf32>
      %33 = tpu.matmul %27, %20, %cst_25 {dimension_numbers = #tpu.dot_dimension_numbers<[1], [0], [0], [1], [0, 0, 1, 1], [], []>} : vector<8x32xf32>, vector<32x128xf32>, vector<8x128xf32> -> vector<8x128xf32>
      %34 = arith.addf %32, %33 : vector<8x128xf32>
      %35 = arith.negf %34 : vector<8x128xf32>
      %36 = math.exp %35 : vector<8x128xf32>
      %cst_26 = arith.constant 1.000000e+00 : f32
      %37 = vector.broadcast %cst_26 : f32 to vector<8x128xf32>
      %38 = arith.addf %37, %36 : vector<8x128xf32>
      %39 = arith.divf %37, %38 : vector<8x128xf32>
      %40 = math.tanh %34 : vector<8x128xf32>
      %41 = arith.select %26, %40, %39 : vector<8x128xi1>, vector<8x128xf32>
      %42 = vector.extract_strided_slice %41 {offsets = [0, 0], sizes = [8, 32], strides = [1, 1]} : vector<8x128xf32> to vector<8x32xf32>
      %43 = vector.extract_strided_slice %41 {offsets = [0, 32], sizes = [8, 32], strides = [1, 1]} : vector<8x128xf32> to vector<8x32xf32>
      %44 = vector.extract_strided_slice %41 {offsets = [0, 64], sizes = [8, 32], strides = [1, 1]} : vector<8x128xf32> to vector<8x32xf32>
      %45 = vector.extract_strided_slice %41 {offsets = [0, 96], sizes = [8, 32], strides = [1, 1]} : vector<8x128xf32> to vector<8x32xf32>
      %46 = arith.mulf %43, %28 : vector<8x32xf32>
      %47 = arith.mulf %42, %44 : vector<8x32xf32>
      %48 = arith.addf %46, %47 : vector<8x32xf32>
      %49 = math.tanh %48 : vector<8x32xf32>
      %50 = arith.mulf %45, %49 : vector<8x32xf32>
      %51 = arith.index_cast %c0_i32_23 : i32 to index
      %c0_27 = arith.constant 0 : index
      %c0_28 = arith.constant 0 : index
      %52 = vector.load %arg10[%51, %c0_27, %c0_28] : memref<8x8x32xf32, #tpu.memory_space<vmem>>, vector<1x8x32xf32>
      %53 = vector.shape_cast %52 : vector<1x8x32xf32> to vector<8x32xf32>
      %54 = vector.shape_cast %50 : vector<8x32xf32> to vector<1x8x32xf32>
      tpu.vector_store %arg10[%51, %c0_27, %c0_28], %54 {strides = array<i32>} : memref<8x8x32xf32, #tpu.memory_space<vmem>>, vector<1x8x32xf32>,
      %c1_i32 = arith.constant 1 : i32
      %c8_i32_29 = arith.constant 8 : i32
      %55 = arith.muli %c1_i32, %c8_i32_29 : i32
      %56 = tpu.assume_multiple %55, 8 : i32
      %57 = arith.index_cast %56 : i32 to index
      %c0_30 = arith.constant 0 : index
      %58 = vector.load %arg9[%57, %c0_30] : memref<64x128xf32, #tpu.memory_space<vmem>>, vector<8x128xf32>
      %cst_31 = arith.constant dense<0.000000e+00> : vector<8x128xf32>
      %59 = tpu.matmul %50, %20, %cst_31 {dimension_numbers = #tpu.dot_dimension_numbers<[1], [0], [0], [1], [0, 0, 1, 1], [], []>} : vector<8x32xf32>, vector<32x128xf32>, vector<8x128xf32> -> vector<8x128xf32>
      %60 = arith.addf %58, %59 : vector<8x128xf32>
      %61 = arith.negf %60 : vector<8x128xf32>
      %62 = math.exp %61 : vector<8x128xf32>
      %cst_32 = arith.constant 1.000000e+00 : f32
      %63 = vector.broadcast %cst_32 : f32 to vector<8x128xf32>
      %64 = arith.addf %63, %62 : vector<8x128xf32>
      %65 = arith.divf %63, %64 : vector<8x128xf32>
      %66 = math.tanh %60 : vector<8x128xf32>
      %67 = arith.select %26, %66, %65 : vector<8x128xi1>, vector<8x128xf32>
      %68 = vector.extract_strided_slice %67 {offsets = [0, 0], sizes = [8, 32], strides = [1, 1]} : vector<8x128xf32> to vector<8x32xf32>
      %69 = vector.extract_strided_slice %67 {offsets = [0, 32], sizes = [8, 32], strides = [1, 1]} : vector<8x128xf32> to vector<8x32xf32>
      %70 = vector.extract_strided_slice %67 {offsets = [0, 64], sizes = [8, 32], strides = [1, 1]} : vector<8x128xf32> to vector<8x32xf32>
      %71 = vector.extract_strided_slice %67 {offsets = [0, 96], sizes = [8, 32], strides = [1, 1]} : vector<8x128xf32> to vector<8x32xf32>
      %72 = arith.mulf %69, %48 : vector<8x32xf32>
      %73 = arith.mulf %68, %70 : vector<8x32xf32>
      %74 = arith.addf %72, %73 : vector<8x32xf32>
      %75 = math.tanh %74 : vector<8x32xf32>
      %76 = arith.mulf %71, %75 : vector<8x32xf32>
      %77 = arith.index_cast %c1_i32 : i32 to index
      %c0_33 = arith.constant 0 : index
      %c0_34 = arith.constant 0 : index
      %78 = vector.load %arg10[%77, %c0_33, %c0_34] : memref<8x8x32xf32, #tpu.memory_space<vmem>>, vector<1x8x32xf32>
      %79 = vector.shape_cast %78 : vector<1x8x32xf32> to vector<8x32xf32>
      %80 = vector.shape_cast %76 : vector<8x32xf32> to vector<1x8x32xf32>
      tpu.vector_store %arg10[%77, %c0_33, %c0_34], %80 {strides = array<i32>} : memref<8x8x32xf32, #tpu.memory_space<vmem>>, vector<1x8x32xf32>,
      %c2_i32 = arith.constant 2 : i32
      %c8_i32_35 = arith.constant 8 : i32
      %81 = arith.muli %c2_i32, %c8_i32_35 : i32
      %82 = tpu.assume_multiple %81, 8 : i32
      %83 = arith.index_cast %82 : i32 to index
      %c0_36 = arith.constant 0 : index
      %84 = vector.load %arg9[%83, %c0_36] : memref<64x128xf32, #tpu.memory_space<vmem>>, vector<8x128xf32>
      %cst_37 = arith.constant dense<0.000000e+00> : vector<8x128xf32>
      %85 = tpu.matmul %76, %20, %cst_37 {dimension_numbers = #tpu.dot_dimension_numbers<[1], [0], [0], [1], [0, 0, 1, 1], [], []>} : vector<8x32xf32>, vector<32x128xf32>, vector<8x128xf32> -> vector<8x128xf32>
      %86 = arith.addf %84, %85 : vector<8x128xf32>
      %87 = arith.negf %86 : vector<8x128xf32>
      %88 = math.exp %87 : vector<8x128xf32>
      %cst_38 = arith.constant 1.000000e+00 : f32
      %89 = vector.broadcast %cst_38 : f32 to vector<8x128xf32>
      %90 = arith.addf %89, %88 : vector<8x128xf32>
      %91 = arith.divf %89, %90 : vector<8x128xf32>
      %92 = math.tanh %86 : vector<8x128xf32>
      %93 = arith.select %26, %92, %91 : vector<8x128xi1>, vector<8x128xf32>
      %94 = vector.extract_strided_slice %93 {offsets = [0, 0], sizes = [8, 32], strides = [1, 1]} : vector<8x128xf32> to vector<8x32xf32>
      %95 = vector.extract_strided_slice %93 {offsets = [0, 32], sizes = [8, 32], strides = [1, 1]} : vector<8x128xf32> to vector<8x32xf32>
      %96 = vector.extract_strided_slice %93 {offsets = [0, 64], sizes = [8, 32], strides = [1, 1]} : vector<8x128xf32> to vector<8x32xf32>
      %97 = vector.extract_strided_slice %93 {offsets = [0, 96], sizes = [8, 32], strides = [1, 1]} : vector<8x128xf32> to vector<8x32xf32>
      %98 = arith.mulf %95, %74 : vector<8x32xf32>
      %99 = arith.mulf %94, %96 : vector<8x32xf32>
      %100 = arith.addf %98, %99 : vector<8x32xf32>
      %101 = math.tanh %100 : vector<8x32xf32>
      %102 = arith.mulf %97, %101 : vector<8x32xf32>
      %103 = arith.index_cast %c2_i32 : i32 to index
      %c0_39 = arith.constant 0 : index
      %c0_40 = arith.constant 0 : index
      %104 = vector.load %arg10[%103, %c0_39, %c0_40] : memref<8x8x32xf32, #tpu.memory_space<vmem>>, vector<1x8x32xf32>
      %105 = vector.shape_cast %104 : vector<1x8x32xf32> to vector<8x32xf32>
      %106 = vector.shape_cast %102 : vector<8x32xf32> to vector<1x8x32xf32>
      tpu.vector_store %arg10[%103, %c0_39, %c0_40], %106 {strides = array<i32>} : memref<8x8x32xf32, #tpu.memory_space<vmem>>, vector<1x8x32xf32>,
      %c3_i32 = arith.constant 3 : i32
      %c8_i32_41 = arith.constant 8 : i32
      %107 = arith.muli %c3_i32, %c8_i32_41 : i32
      %108 = tpu.assume_multiple %107, 8 : i32
      %109 = arith.index_cast %108 : i32 to index
      %c0_42 = arith.constant 0 : index
      %110 = vector.load %arg9[%109, %c0_42] : memref<64x128xf32, #tpu.memory_space<vmem>>, vector<8x128xf32>
      %cst_43 = arith.constant dense<0.000000e+00> : vector<8x128xf32>
      %111 = tpu.matmul %102, %20, %cst_43 {dimension_numbers = #tpu.dot_dimension_numbers<[1], [0], [0], [1], [0, 0, 1, 1], [], []>} : vector<8x32xf32>, vector<32x128xf32>, vector<8x128xf32> -> vector<8x128xf32>
      %112 = arith.addf %110, %111 : vector<8x128xf32>
      %113 = arith.negf %112 : vector<8x128xf32>
      %114 = math.exp %113 : vector<8x128xf32>
      %cst_44 = arith.constant 1.000000e+00 : f32
      %115 = vector.broadcast %cst_44 : f32 to vector<8x128xf32>
      %116 = arith.addf %115, %114 : vector<8x128xf32>
      %117 = arith.divf %115, %116 : vector<8x128xf32>
      %118 = math.tanh %112 : vector<8x128xf32>
      %119 = arith.select %26, %118, %117 : vector<8x128xi1>, vector<8x128xf32>
      %120 = vector.extract_strided_slice %119 {offsets = [0, 0], sizes = [8, 32], strides = [1, 1]} : vector<8x128xf32> to vector<8x32xf32>
      %121 = vector.extract_strided_slice %119 {offsets = [0, 32], sizes = [8, 32], strides = [1, 1]} : vector<8x128xf32> to vector<8x32xf32>
      %122 = vector.extract_strided_slice %119 {offsets = [0, 64], sizes = [8, 32], strides = [1, 1]} : vector<8x128xf32> to vector<8x32xf32>
      %123 = vector.extract_strided_slice %119 {offsets = [0, 96], sizes = [8, 32], strides = [1, 1]} : vector<8x128xf32> to vector<8x32xf32>
      %124 = arith.mulf %121, %100 : vector<8x32xf32>
      %125 = arith.mulf %120, %122 : vector<8x32xf32>
      %126 = arith.addf %124, %125 : vector<8x32xf32>
      %127 = math.tanh %126 : vector<8x32xf32>
      %128 = arith.mulf %123, %127 : vector<8x32xf32>
      %129 = arith.index_cast %c3_i32 : i32 to index
      %c0_45 = arith.constant 0 : index
      %c0_46 = arith.constant 0 : index
      %130 = vector.load %arg10[%129, %c0_45, %c0_46] : memref<8x8x32xf32, #tpu.memory_space<vmem>>, vector<1x8x32xf32>
      %131 = vector.shape_cast %130 : vector<1x8x32xf32> to vector<8x32xf32>
      %132 = vector.shape_cast %128 : vector<8x32xf32> to vector<1x8x32xf32>
      tpu.vector_store %arg10[%129, %c0_45, %c0_46], %132 {strides = array<i32>} : memref<8x8x32xf32, #tpu.memory_space<vmem>>, vector<1x8x32xf32>,
      %c4_i32 = arith.constant 4 : i32
      %c8_i32_47 = arith.constant 8 : i32
      %133 = arith.muli %c4_i32, %c8_i32_47 : i32
      %134 = tpu.assume_multiple %133, 8 : i32
      %135 = arith.index_cast %134 : i32 to index
      %c0_48 = arith.constant 0 : index
      %136 = vector.load %arg9[%135, %c0_48] : memref<64x128xf32, #tpu.memory_space<vmem>>, vector<8x128xf32>
      %cst_49 = arith.constant dense<0.000000e+00> : vector<8x128xf32>
      %137 = tpu.matmul %128, %20, %cst_49 {dimension_numbers = #tpu.dot_dimension_numbers<[1], [0], [0], [1], [0, 0, 1, 1], [], []>} : vector<8x32xf32>, vector<32x128xf32>, vector<8x128xf32> -> vector<8x128xf32>
      %138 = arith.addf %136, %137 : vector<8x128xf32>
      %139 = arith.negf %138 : vector<8x128xf32>
      %140 = math.exp %139 : vector<8x128xf32>
      %cst_50 = arith.constant 1.000000e+00 : f32
      %141 = vector.broadcast %cst_50 : f32 to vector<8x128xf32>
      %142 = arith.addf %141, %140 : vector<8x128xf32>
      %143 = arith.divf %141, %142 : vector<8x128xf32>
      %144 = math.tanh %138 : vector<8x128xf32>
      %145 = arith.select %26, %144, %143 : vector<8x128xi1>, vector<8x128xf32>
      %146 = vector.extract_strided_slice %145 {offsets = [0, 0], sizes = [8, 32], strides = [1, 1]} : vector<8x128xf32> to vector<8x32xf32>
      %147 = vector.extract_strided_slice %145 {offsets = [0, 32], sizes = [8, 32], strides = [1, 1]} : vector<8x128xf32> to vector<8x32xf32>
      %148 = vector.extract_strided_slice %145 {offsets = [0, 64], sizes = [8, 32], strides = [1, 1]} : vector<8x128xf32> to vector<8x32xf32>
      %149 = vector.extract_strided_slice %145 {offsets = [0, 96], sizes = [8, 32], strides = [1, 1]} : vector<8x128xf32> to vector<8x32xf32>
      %150 = arith.mulf %147, %126 : vector<8x32xf32>
      %151 = arith.mulf %146, %148 : vector<8x32xf32>
      %152 = arith.addf %150, %151 : vector<8x32xf32>
      %153 = math.tanh %152 : vector<8x32xf32>
      %154 = arith.mulf %149, %153 : vector<8x32xf32>
      %155 = arith.index_cast %c4_i32 : i32 to index
      %c0_51 = arith.constant 0 : index
      %c0_52 = arith.constant 0 : index
      %156 = vector.load %arg10[%155, %c0_51, %c0_52] : memref<8x8x32xf32, #tpu.memory_space<vmem>>, vector<1x8x32xf32>
      %157 = vector.shape_cast %156 : vector<1x8x32xf32> to vector<8x32xf32>
      %158 = vector.shape_cast %154 : vector<8x32xf32> to vector<1x8x32xf32>
      tpu.vector_store %arg10[%155, %c0_51, %c0_52], %158 {strides = array<i32>} : memref<8x8x32xf32, #tpu.memory_space<vmem>>, vector<1x8x32xf32>,
      %c5_i32 = arith.constant 5 : i32
      %c8_i32_53 = arith.constant 8 : i32
      %159 = arith.muli %c5_i32, %c8_i32_53 : i32
      %160 = tpu.assume_multiple %159, 8 : i32
      %161 = arith.index_cast %160 : i32 to index
      %c0_54 = arith.constant 0 : index
      %162 = vector.load %arg9[%161, %c0_54] : memref<64x128xf32, #tpu.memory_space<vmem>>, vector<8x128xf32>
      %cst_55 = arith.constant dense<0.000000e+00> : vector<8x128xf32>
      %163 = tpu.matmul %154, %20, %cst_55 {dimension_numbers = #tpu.dot_dimension_numbers<[1], [0], [0], [1], [0, 0, 1, 1], [], []>} : vector<8x32xf32>, vector<32x128xf32>, vector<8x128xf32> -> vector<8x128xf32>
      %164 = arith.addf %162, %163 : vector<8x128xf32>
      %165 = arith.negf %164 : vector<8x128xf32>
      %166 = math.exp %165 : vector<8x128xf32>
      %cst_56 = arith.constant 1.000000e+00 : f32
      %167 = vector.broadcast %cst_56 : f32 to vector<8x128xf32>
      %168 = arith.addf %167, %166 : vector<8x128xf32>
      %169 = arith.divf %167, %168 : vector<8x128xf32>
      %170 = math.tanh %164 : vector<8x128xf32>
      %171 = arith.select %26, %170, %169 : vector<8x128xi1>, vector<8x128xf32>
      %172 = vector.extract_strided_slice %171 {offsets = [0, 0], sizes = [8, 32], strides = [1, 1]} : vector<8x128xf32> to vector<8x32xf32>
      %173 = vector.extract_strided_slice %171 {offsets = [0, 32], sizes = [8, 32], strides = [1, 1]} : vector<8x128xf32> to vector<8x32xf32>
      %174 = vector.extract_strided_slice %171 {offsets = [0, 64], sizes = [8, 32], strides = [1, 1]} : vector<8x128xf32> to vector<8x32xf32>
      %175 = vector.extract_strided_slice %171 {offsets = [0, 96], sizes = [8, 32], strides = [1, 1]} : vector<8x128xf32> to vector<8x32xf32>
      %176 = arith.mulf %173, %152 : vector<8x32xf32>
      %177 = arith.mulf %172, %174 : vector<8x32xf32>
      %178 = arith.addf %176, %177 : vector<8x32xf32>
      %179 = math.tanh %178 : vector<8x32xf32>
      %180 = arith.mulf %175, %179 : vector<8x32xf32>
      %181 = arith.index_cast %c5_i32 : i32 to index
      %c0_57 = arith.constant 0 : index
      %c0_58 = arith.constant 0 : index
      %182 = vector.load %arg10[%181, %c0_57, %c0_58] : memref<8x8x32xf32, #tpu.memory_space<vmem>>, vector<1x8x32xf32>
      %183 = vector.shape_cast %182 : vector<1x8x32xf32> to vector<8x32xf32>
      %184 = vector.shape_cast %180 : vector<8x32xf32> to vector<1x8x32xf32>
      tpu.vector_store %arg10[%181, %c0_57, %c0_58], %184 {strides = array<i32>} : memref<8x8x32xf32, #tpu.memory_space<vmem>>, vector<1x8x32xf32>,
      %c6_i32 = arith.constant 6 : i32
      %c8_i32_59 = arith.constant 8 : i32
      %185 = arith.muli %c6_i32, %c8_i32_59 : i32
      %186 = tpu.assume_multiple %185, 8 : i32
      %187 = arith.index_cast %186 : i32 to index
      %c0_60 = arith.constant 0 : index
      %188 = vector.load %arg9[%187, %c0_60] : memref<64x128xf32, #tpu.memory_space<vmem>>, vector<8x128xf32>
      %cst_61 = arith.constant dense<0.000000e+00> : vector<8x128xf32>
      %189 = tpu.matmul %180, %20, %cst_61 {dimension_numbers = #tpu.dot_dimension_numbers<[1], [0], [0], [1], [0, 0, 1, 1], [], []>} : vector<8x32xf32>, vector<32x128xf32>, vector<8x128xf32> -> vector<8x128xf32>
      %190 = arith.addf %188, %189 : vector<8x128xf32>
      %191 = arith.negf %190 : vector<8x128xf32>
      %192 = math.exp %191 : vector<8x128xf32>
      %cst_62 = arith.constant 1.000000e+00 : f32
      %193 = vector.broadcast %cst_62 : f32 to vector<8x128xf32>
      %194 = arith.addf %193, %192 : vector<8x128xf32>
      %195 = arith.divf %193, %194 : vector<8x128xf32>
      %196 = math.tanh %190 : vector<8x128xf32>
      %197 = arith.select %26, %196, %195 : vector<8x128xi1>, vector<8x128xf32>
      %198 = vector.extract_strided_slice %197 {offsets = [0, 0], sizes = [8, 32], strides = [1, 1]} : vector<8x128xf32> to vector<8x32xf32>
      %199 = vector.extract_strided_slice %197 {offsets = [0, 32], sizes = [8, 32], strides = [1, 1]} : vector<8x128xf32> to vector<8x32xf32>
      %200 = vector.extract_strided_slice %197 {offsets = [0, 64], sizes = [8, 32], strides = [1, 1]} : vector<8x128xf32> to vector<8x32xf32>
      %201 = vector.extract_strided_slice %197 {offsets = [0, 96], sizes = [8, 32], strides = [1, 1]} : vector<8x128xf32> to vector<8x32xf32>
      %202 = arith.mulf %199, %178 : vector<8x32xf32>
      %203 = arith.mulf %198, %200 : vector<8x32xf32>
      %204 = arith.addf %202, %203 : vector<8x32xf32>
      %205 = math.tanh %204 : vector<8x32xf32>
      %206 = arith.mulf %201, %205 : vector<8x32xf32>
      %207 = arith.index_cast %c6_i32 : i32 to index
      %c0_63 = arith.constant 0 : index
      %c0_64 = arith.constant 0 : index
      %208 = vector.load %arg10[%207, %c0_63, %c0_64] : memref<8x8x32xf32, #tpu.memory_space<vmem>>, vector<1x8x32xf32>
      %209 = vector.shape_cast %208 : vector<1x8x32xf32> to vector<8x32xf32>
      %210 = vector.shape_cast %206 : vector<8x32xf32> to vector<1x8x32xf32>
      tpu.vector_store %arg10[%207, %c0_63, %c0_64], %210 {strides = array<i32>} : memref<8x8x32xf32, #tpu.memory_space<vmem>>, vector<1x8x32xf32>,
      %c7_i32 = arith.constant 7 : i32
      %c8_i32_65 = arith.constant 8 : i32
      %211 = arith.muli %c7_i32, %c8_i32_65 : i32
      %212 = tpu.assume_multiple %211, 8 : i32
      %213 = arith.index_cast %212 : i32 to index
      %c0_66 = arith.constant 0 : index
      %214 = vector.load %arg9[%213, %c0_66] : memref<64x128xf32, #tpu.memory_space<vmem>>, vector<8x128xf32>
      %cst_67 = arith.constant dense<0.000000e+00> : vector<8x128xf32>
      %215 = tpu.matmul %206, %20, %cst_67 {dimension_numbers = #tpu.dot_dimension_numbers<[1], [0], [0], [1], [0, 0, 1, 1], [], []>} : vector<8x32xf32>, vector<32x128xf32>, vector<8x128xf32> -> vector<8x128xf32>
      %216 = arith.addf %214, %215 : vector<8x128xf32>
      %217 = arith.negf %216 : vector<8x128xf32>
      %218 = math.exp %217 : vector<8x128xf32>
      %cst_68 = arith.constant 1.000000e+00 : f32
      %219 = vector.broadcast %cst_68 : f32 to vector<8x128xf32>
      %220 = arith.addf %219, %218 : vector<8x128xf32>
      %221 = arith.divf %219, %220 : vector<8x128xf32>
      %222 = math.tanh %216 : vector<8x128xf32>
      %223 = arith.select %26, %222, %221 : vector<8x128xi1>, vector<8x128xf32>
      %224 = vector.extract_strided_slice %223 {offsets = [0, 0], sizes = [8, 32], strides = [1, 1]} : vector<8x128xf32> to vector<8x32xf32>
      %225 = vector.extract_strided_slice %223 {offsets = [0, 32], sizes = [8, 32], strides = [1, 1]} : vector<8x128xf32> to vector<8x32xf32>
      %226 = vector.extract_strided_slice %223 {offsets = [0, 64], sizes = [8, 32], strides = [1, 1]} : vector<8x128xf32> to vector<8x32xf32>
      %227 = vector.extract_strided_slice %223 {offsets = [0, 96], sizes = [8, 32], strides = [1, 1]} : vector<8x128xf32> to vector<8x32xf32>
      %228 = arith.mulf %225, %204 : vector<8x32xf32>
      %229 = arith.mulf %224, %226 : vector<8x32xf32>
      %230 = arith.addf %228, %229 : vector<8x32xf32>
      %231 = math.tanh %230 : vector<8x32xf32>
      %232 = arith.mulf %227, %231 : vector<8x32xf32>
      %233 = arith.index_cast %c7_i32 : i32 to index
      %c0_69 = arith.constant 0 : index
      %c0_70 = arith.constant 0 : index
      %234 = vector.load %arg10[%233, %c0_69, %c0_70] : memref<8x8x32xf32, #tpu.memory_space<vmem>>, vector<1x8x32xf32>
      %235 = vector.shape_cast %234 : vector<1x8x32xf32> to vector<8x32xf32>
      %236 = vector.shape_cast %232 : vector<8x32xf32> to vector<1x8x32xf32>
      tpu.vector_store %arg10[%233, %c0_69, %c0_70], %236 {strides = array<i32>} : memref<8x8x32xf32, #tpu.memory_space<vmem>>, vector<1x8x32xf32>,
      %c8_i32_71 = arith.constant 8 : i32
      %c0_72 = arith.constant 0 : index
      %c0_73 = arith.constant 0 : index
      %c0_74 = arith.constant 0 : index
      %237 = vector.load %arg10[%c0_72, %c0_73, %c0_74] : memref<8x8x32xf32, #tpu.memory_space<vmem>>, vector<8x1x32xf32>
      %238 = vector.shape_cast %237 : vector<8x1x32xf32> to vector<8x32xf32>
      %c0_75 = arith.constant 0 : index
      %c0_76 = arith.constant 0 : index
      %239 = vector.load %arg11[%c0_75, %c0_76] : memref<64x32xf32, #tpu.memory_space<vmem>>, vector<8x32xf32>
      tpu.vector_store %arg11[%c0_75, %c0_76], %238 {strides = array<i32>} : memref<64x32xf32, #tpu.memory_space<vmem>>, vector<8x32xf32>,
      %c0_77 = arith.constant 0 : index
      %c1 = arith.constant 1 : index
      %c0_78 = arith.constant 0 : index
      %240 = vector.load %arg10[%c0_77, %c1, %c0_78] : memref<8x8x32xf32, #tpu.memory_space<vmem>>, vector<8x1x32xf32>
      %241 = vector.shape_cast %240 : vector<8x1x32xf32> to vector<8x32xf32>
      %c8 = arith.constant 8 : index
      %c0_79 = arith.constant 0 : index
      %242 = vector.load %arg11[%c8, %c0_79] : memref<64x32xf32, #tpu.memory_space<vmem>>, vector<8x32xf32>
      tpu.vector_store %arg11[%c8, %c0_79], %241 {strides = array<i32>} : memref<64x32xf32, #tpu.memory_space<vmem>>, vector<8x32xf32>,
      %c0_80 = arith.constant 0 : index
      %c2 = arith.constant 2 : index
      %c0_81 = arith.constant 0 : index
      %243 = vector.load %arg10[%c0_80, %c2, %c0_81] : memref<8x8x32xf32, #tpu.memory_space<vmem>>, vector<8x1x32xf32>
      %244 = vector.shape_cast %243 : vector<8x1x32xf32> to vector<8x32xf32>
      %c16 = arith.constant 16 : index
      %c0_82 = arith.constant 0 : index
      %245 = vector.load %arg11[%c16, %c0_82] : memref<64x32xf32, #tpu.memory_space<vmem>>, vector<8x32xf32>
      tpu.vector_store %arg11[%c16, %c0_82], %244 {strides = array<i32>} : memref<64x32xf32, #tpu.memory_space<vmem>>, vector<8x32xf32>,
      %c0_83 = arith.constant 0 : index
      %c3 = arith.constant 3 : index
      %c0_84 = arith.constant 0 : index
      %246 = vector.load %arg10[%c0_83, %c3, %c0_84] : memref<8x8x32xf32, #tpu.memory_space<vmem>>, vector<8x1x32xf32>
      %247 = vector.shape_cast %246 : vector<8x1x32xf32> to vector<8x32xf32>
      %c24 = arith.constant 24 : index
      %c0_85 = arith.constant 0 : index
      %248 = vector.load %arg11[%c24, %c0_85] : memref<64x32xf32, #tpu.memory_space<vmem>>, vector<8x32xf32>
      tpu.vector_store %arg11[%c24, %c0_85], %247 {strides = array<i32>} : memref<64x32xf32, #tpu.memory_space<vmem>>, vector<8x32xf32>,
      %c0_86 = arith.constant 0 : index
      %c4 = arith.constant 4 : index
      %c0_87 = arith.constant 0 : index
      %249 = vector.load %arg10[%c0_86, %c4, %c0_87] : memref<8x8x32xf32, #tpu.memory_space<vmem>>, vector<8x1x32xf32>
      %250 = vector.shape_cast %249 : vector<8x1x32xf32> to vector<8x32xf32>
      %c32 = arith.constant 32 : index
      %c0_88 = arith.constant 0 : index
      %251 = vector.load %arg11[%c32, %c0_88] : memref<64x32xf32, #tpu.memory_space<vmem>>, vector<8x32xf32>
      tpu.vector_store %arg11[%c32, %c0_88], %250 {strides = array<i32>} : memref<64x32xf32, #tpu.memory_space<vmem>>, vector<8x32xf32>,
      %c0_89 = arith.constant 0 : index
      %c5 = arith.constant 5 : index
      %c0_90 = arith.constant 0 : index
      %252 = vector.load %arg10[%c0_89, %c5, %c0_90] : memref<8x8x32xf32, #tpu.memory_space<vmem>>, vector<8x1x32xf32>
      %253 = vector.shape_cast %252 : vector<8x1x32xf32> to vector<8x32xf32>
      %c40 = arith.constant 40 : index
      %c0_91 = arith.constant 0 : index
      %254 = vector.load %arg11[%c40, %c0_91] : memref<64x32xf32, #tpu.memory_space<vmem>>, vector<8x32xf32>
      tpu.vector_store %arg11[%c40, %c0_91], %253 {strides = array<i32>} : memref<64x32xf32, #tpu.memory_space<vmem>>, vector<8x32xf32>,
      %c0_92 = arith.constant 0 : index
      %c6 = arith.constant 6 : index
      %c0_93 = arith.constant 0 : index
      %255 = vector.load %arg10[%c0_92, %c6, %c0_93] : memref<8x8x32xf32, #tpu.memory_space<vmem>>, vector<8x1x32xf32>
      %256 = vector.shape_cast %255 : vector<8x1x32xf32> to vector<8x32xf32>
      %c48 = arith.constant 48 : index
      %c0_94 = arith.constant 0 : index
      %257 = vector.load %arg11[%c48, %c0_94] : memref<64x32xf32, #tpu.memory_space<vmem>>, vector<8x32xf32>
      tpu.vector_store %arg11[%c48, %c0_94], %256 {strides = array<i32>} : memref<64x32xf32, #tpu.memory_space<vmem>>, vector<8x32xf32>,
      %c0_95 = arith.constant 0 : index
      %c7 = arith.constant 7 : index
      %c0_96 = arith.constant 0 : index
      %258 = vector.load %arg10[%c0_95, %c7, %c0_96] : memref<8x8x32xf32, #tpu.memory_space<vmem>>, vector<8x1x32xf32>
      %259 = vector.shape_cast %258 : vector<8x1x32xf32> to vector<8x32xf32>
      %c56 = arith.constant 56 : index
      %c0_97 = arith.constant 0 : index
      %260 = vector.load %arg11[%c56, %c0_97] : memref<64x32xf32, #tpu.memory_space<vmem>>, vector<8x32xf32>
      tpu.vector_store %arg11[%c56, %c0_97], %259 {strides = array<i32>} : memref<64x32xf32, #tpu.memory_space<vmem>>, vector<8x32xf32>,
    } else {
    }
    %c0 = arith.constant 0 : index
    %c0_1 = arith.constant 0 : index
    %3 = vector.load %arg11[%c0, %c0_1] : memref<64x32xf32, #tpu.memory_space<vmem>>, vector<64x32xf32>
    %c0_2 = arith.constant 0 : index
    %c0_3 = arith.constant 0 : index
    %4 = vector.load %arg6[%c0_2, %c0_3] : memref<32x128xf32, #tpu.memory_space<vmem>>, vector<32x128xf32>
    %cst = arith.constant dense<0.000000e+00> : vector<64x128xf32>
    %5 = tpu.matmul %3, %4, %cst {dimension_numbers = #tpu.dot_dimension_numbers<[1], [0], [0], [1], [0, 0, 1, 1], [], []>} : vector<64x32xf32>, vector<32x128xf32>, vector<64x128xf32> -> vector<64x128xf32>
    %c0_4 = arith.constant 0 : index
    %c0_5 = arith.constant 0 : index
    %6 = vector.load %arg7[%c0_4, %c0_5] : memref<1x128xf32, #tpu.memory_space<vmem>>, vector<1x128xf32>
    %7 = vector.broadcast %6 : vector<1x128xf32> to vector<64x128xf32>
    %8 = arith.addf %5, %7 : vector<64x128xf32>
    %c0_6 = arith.constant 0 : index
    %c0_7 = arith.constant 0 : index
    %c0_8 = arith.constant 0 : index
    %9 = vector.load %arg8[%c0_6, %c0_7, %c0_8] : memref<1x64x128xf32, #tpu.memory_space<vmem>>, vector<1x64x128xf32>
    %10 = vector.shape_cast %9 : vector<1x64x128xf32> to vector<64x128xf32>
    %11 = vector.shape_cast %8 : vector<64x128xf32> to vector<1x64x128xf32>
    tpu.vector_store %arg8[%c0_6, %c0_7, %c0_8], %11 {strides = array<i32>} : memref<1x64x128xf32, #tpu.memory_space<vmem>>, vector<1x64x128xf32>,
    return
  }
  func.func @transform_0(%arg0: i32, %arg1: i32) -> (i32, i32, i32) {
    %c0_i32 = arith.constant 0 : i32
    %c0_i32_0 = arith.constant 0 : i32
    %c0_i32_1 = arith.constant 0 : i32
    return %arg0, %c0_i32, %c0_i32_0 : i32, i32, i32
  }
  func.func @transform_1(%arg0: i32, %arg1: i32) -> (i32, i32) {
    %c0_i32 = arith.constant 0 : i32
    %c0_i32_0 = arith.constant 0 : i32
    %c0_i32_1 = arith.constant 0 : i32
    return %c0_i32, %c0_i32_0 : i32, i32
  }
  func.func @transform_2(%arg0: i32, %arg1: i32) -> (i32, i32) {
    %c0_i32 = arith.constant 0 : i32
    %c0_i32_0 = arith.constant 0 : i32
    %c0_i32_1 = arith.constant 0 : i32
    return %c0_i32, %c0_i32_0 : i32, i32
  }
  func.func @transform_3(%arg0: i32, %arg1: i32) -> (i32, i32) {
    %c0_i32 = arith.constant 0 : i32
    %c0_i32_0 = arith.constant 0 : i32
    %c0_i32_1 = arith.constant 0 : i32
    return %c0_i32, %c0_i32_0 : i32, i32
  }
  func.func @transform_4(%arg0: i32, %arg1: i32) -> (i32, i32) {
    %c0_i32 = arith.constant 0 : i32
    %c0_i32_0 = arith.constant 0 : i32
    return %c0_i32, %arg1 : i32, i32
  }
  func.func @transform_5(%arg0: i32, %arg1: i32) -> (i32, i32) {
    %c0_i32 = arith.constant 0 : i32
    %c0_i32_0 = arith.constant 0 : i32
    return %c0_i32, %arg1 : i32, i32
  }
  func.func @transform_6(%arg0: i32, %arg1: i32) -> (i32, i32, i32) {
    %c0_i32 = arith.constant 0 : i32
    %c0_i32_0 = arith.constant 0 : i32
    return %arg0, %c0_i32, %arg1 : i32, i32, i32
  }
}

</mosaic_0001>

<llo_original>
// kernel: tpu_custom_call.1
$region0: #{tpu_custom_call.1}
  #allocation0 [shape = 'u32[]', space=smem, size = 0x4, offset = 0x4, fixed_abs, tag = 'smem constant byte address 0x4 - core index']
  #allocation1 [shape = 'u32[144,128]{1,0:T(1,128)}', space=vmem, size = 0x12000, scoped, tag = 'internal scratch']
  #allocation2 [shape = 'f32[64,128]{1,0:T(8,128)}', space=vmem, size = 0x8000, scoped, tag = 'scratch operand']
  #allocation3 [shape = 'f32[8,8,32]{2,1,0:T(8,128)}', space=vmem, size = 0x8000, scoped, tag = 'scratch operand']
  #allocation4 [shape = 'f32[64,32]{1,0:T(8,128)}', space=vmem, size = 0x8000, scoped, tag = 'scratch operand']
  %s0 = inlined_call_operand.vmem [shape: f32[1,64,32], index: 0, kind: input, shape index: {}]
  %s1 = inlined_call_operand.vmem [shape: f32[32,128], index: 1, kind: input, shape index: {}]
  %s2 = inlined_call_operand.vmem [shape: f32[32,128], index: 2, kind: input, shape index: {}]
  %s3 = inlined_call_operand.vmem [shape: f32[1,128], index: 3, kind: input, shape index: {}]
  %s4 = inlined_call_operand.vmem [shape: f32[32,128], index: 4, kind: input, shape index: {}]
  %s5 = inlined_call_operand.vmem [shape: f32[1,128], index: 5, kind: input, shape index: {}]
  %s6 = inlined_call_operand.hbm [shape: f32[1,64,128], index: 6, kind: output, shape index: {}]
  %s7 = sld [smem:[#allocation0]]
  $region38: #{tpu_custom_call.1} parent=0
    _
  %s9 = ssub.s32 1, %s7
  %s10 = scalar_select 0, %s9, %s7
  $region1: #{tpu_custom_call.1} parent=0
    #allocation5 [shape = 'u8[32768]{0}', space=vmem, size = 0x8000, scoped, tag = 'output window, operand 0, single buffered']
    #allocation6 [shape = 's32[1]{0}', space=sflag, size = 0x4, scoped, tag = 'scoped memory for tpu_custom_call.1']
    %11 = vsyncpa [#allocation6], 0
    // Predicated region
    $region2: #{tpu_custom_call.1} parent=1 // pred_check
      _
    $region3: #{tpu_custom_call.1} parent=1 // pred_check_branch
      %13 = sbr.rel (0) target = $region5
    $region4: #{tpu_custom_call.1} parent=1 // pred_region
      _
    $region5: #{tpu_custom_call.1} parent=1 // pred_fallthru
      _
    // Predicated region
    $region6: #{tpu_custom_call.1} parent=1 // pred_check
      _
    $region7: #{tpu_custom_call.1} parent=1 // pred_check_branch
      %15 = sbr.rel (0) target = $region9
    $region8: #{tpu_custom_call.1} parent=1 // pred_region
      _
    $region9: #{tpu_custom_call.1} parent=1 // pred_fallthru
      _
    // Predicated region
    $region10: #{tpu_custom_call.1} parent=1 // pred_check
      _
    $region11: #{tpu_custom_call.1} parent=1 // pred_check_branch
      %17 = sbr.rel (0) target = $region13
    $region12: #{tpu_custom_call.1} parent=1 // pred_region
      _
    $region13: #{tpu_custom_call.1} parent=1 // pred_fallthru
      _
    // Predicated region
    $region14: #{tpu_custom_call.1} parent=1 // pred_check
      _
    $region15: #{tpu_custom_call.1} parent=1 // pred_check_branch
      %19 = sbr.rel (0) target = $region17
    $region16: #{tpu_custom_call.1} parent=1 // pred_region
      _
    $region17: #{tpu_custom_call.1} parent=1 // pred_fallthru
      _
    // Predicated region
    $region18: #{tpu_custom_call.1} parent=1 // pred_check
      _
    $region19: #{tpu_custom_call.1} parent=1 // pred_check_branch
      %21 = sbr.rel (0) target = $region21
    $region20: #{tpu_custom_call.1} parent=1 // pred_region
      _
    $region21: #{tpu_custom_call.1} parent=1 // pred_fallthru
      _
    // Predicated region
    $region22: #{tpu_custom_call.1} parent=1 // pred_check
      _
    $region23: #{tpu_custom_call.1} parent=1 // pred_check_branch
      %23 = sbr.rel (0) target = $region25
    $region24: #{tpu_custom_call.1} parent=1 // pred_region
      _
    $region25: #{tpu_custom_call.1} parent=1 // pred_fallthru
      _
    %p24 = scmp.eq.s32.totalorder 0, 0
    // Predicated region
    $region26: #{tpu_custom_call.1} parent=1 // pred_check
      %p25 = pneg %p24
    $region27: #{tpu_custom_call.1} parent=1 // pred_check_branch
      %27 = sbr.rel (%p25) target = $region29
    $region28: #{tpu_custom_call.1} parent=1 // pred_region
      %v28 = vld [vmem:[%s0] sm:$0xff]
      %v29 = vld [vmem:[%s0 + $0x8] sm:$0xff]
      %v30 = vld [vmem:[%s0 + $0x10] sm:$0xff]
      %v31 = vld [vmem:[%s0 + $0x18] sm:$0xff]
      %v32 = vld [vmem:[%s0 + $0x20] sm:$0xff]
      %v33 = vld [vmem:[%s0 + $0x28] sm:$0xff]
      %v34 = vld [vmem:[%s0 + $0x30] sm:$0xff]
      %v35 = vld [vmem:[%s0 + $0x38] sm:$0xff]
      %v36 = vld [vmem:[%s1] sm:$0xff]
      %v37 = vld [vmem:[%s1 + $0x8] sm:$0xff]
      %v38 = vld [vmem:[%s1 + $0x10] sm:$0xff]
      %v39 = vld [vmem:[%s1 + $0x18] sm:$0xff]
      %v40 = vld [vmem:[%s3] sm:$0x1]
      %v42 = vlaneseq
      %v43 = vshrl.u32 %v42, 7
      %v44 = vsub.s32 0, %v43
      %v45 = vrot.slane %v40, %v44
      %vm47 = vcmask 261120
      %v49 = vsel %vm47, %v28, 0
      %v52 = vsel %vm47, %v29, 0
      %v55 = vsel %vm47, %v30, 0
      %v58 = vsel %vm47, %v31, 0
      %v61 = vsel %vm47, %v32, 0
      %v64 = vsel %vm47, %v33, 0
      %v67 = vsel %vm47, %v34, 0
      %v70 = vsel %vm47, %v35, 0
      %72 = vmatprep.subr.mxu0 0.0
      %73 = vmatpush1.msra.mxu0 %v36
      %74 = vmatprep.subr.mxu0 0.0
      %75 = vmatpush1.msra.mxu0 %v37
      %76 = vmatprep.subr.mxu0 0.0
      %77 = vmatpush1.msra.mxu0 %v38
      %78 = vmatprep.subr.mxu0 0.0
      %79 = vmatpush1.msra.mxu0 %v39
      %80 = vmatprep.subr.mxu0 0.0
      %81 = vmatpush1.msra.mxu0 0.0
      %82 = vmatprep.subr.mxu0 0.0
      %83 = vmatpush1.msra.mxu0 0.0
      %84 = vmatprep.subr.mxu0 0.0
      %85 = vmatpush1.msra.mxu0 0.0
      %86 = vmatprep.subr.mxu0 0.0
      %87 = vmatpush1.msra.mxu0 0.0
      %88 = vmatprep.subr.mxu0 0.0
      %89 = vmatpush1.msra.mxu0 0.0
      %90 = vmatprep.subr.mxu0 0.0
      %91 = vmatpush1.msra.mxu0 0.0
      %92 = vmatprep.subr.mxu0 0.0
      %93 = vmatpush1.msra.mxu0 0.0
      %94 = vmatprep.subr.mxu0 0.0
      %95 = vmatpush1.msra.mxu0 0.0
      %96 = vmatprep.subr.mxu0 0.0
      %97 = vmatpush1.msra.mxu0 0.0
      %98 = vmatprep.subr.mxu0 0.0
      %99 = vmatpush1.msra.mxu0 0.0
      %100 = vmatprep.subr.mxu0 0.0
      %101 = vmatpush1.msra.mxu0 0.0
      %102 = vmatprep.subr.mxu0 0.0
      %103 = vmatpush1.msra.mxu0 0.0
      %104 = vmatprep.subr.mxu0 0.0
      %105 = vmatpush1.msra.mxu0 0.0
      %106 = vmatprep.subr.mxu0 0.0
      %107 = vmatpush1.msra.mxu0 0.0
      %108 = vmatprep.subr.mxu0 0.0
      %109 = vmatpush1.msra.mxu0 0.0
      %110 = vmatprep.subr.mxu0 0.0
      %111 = vmatpush1.msra.mxu0 0.0
      %112 = vmatprep.subr.mxu0 0.0
      %113 = vmatpush1.msra.mxu0 0.0
      %114 = vmatprep.subr.mxu0 0.0
      %115 = vmatpush1.msra.mxu0 0.0
      %116 = vmatprep.subr.mxu0 0.0
      %117 = vmatpush1.msra.mxu0 0.0
      %118 = vmatprep.subr.mxu0 0.0
      %119 = vmatpush1.msra.mxu0 0.0
      %120 = vmatprep.subr.mxu0 0.0
      %121 = vmatpush1.msra.mxu0 0.0
      %122 = vmatprep.subr.mxu0 0.0
      %123 = vmatpush1.msra.mxu0 0.0
      %124 = vmatprep.subr.mxu0 0.0
      %125 = vmatpush1.msra.mxu0 0.0
      %126 = vmatprep.subr.mxu0 0.0
      %127 = vmatpush1.msra.mxu0 0.0
      %128 = vmatprep.subr.mxu0 0.0
      %129 = vmatpush1.msra.mxu0 0.0
      %130 = vmatprep.subr.mxu0 0.0
      %131 = vmatpush1.msra.mxu0 0.0
      %132 = vmatprep.subr.mxu0 0.0
      %133 = vmatpush1.msra.mxu0 0.0
      %134 = vmatprep.subr.mxu0 0.0
      %135 = vmatpush1.msra.mxu0 0.0
      %136 = vmatprep.mubr.f32.mxu0 0.0
      %137 = vmatmul.mubr.f32.gmra.mrb[0].mxu0 %v49
      %v138 = vpop.f32.mrb[0].mxu0
      %v139 = vadd.f32 %v45, %v138
      %v140 = vpop.f32.mrb[0].mxu0
      %141 = vmatprep.mubr.f32.mxu0 0.0
      %142 = vmatmul.mubr.f32.gmra.mrb[0].mxu0 %v52
      %v143 = vpop.f32.mrb[0].mxu0
      %v144 = vadd.f32 %v45, %v143
      %v145 = vpop.f32.mrb[0].mxu0
      %146 = vmatprep.mubr.f32.mxu0 0.0
      %147 = vmatmul.mubr.f32.gmra.mrb[0].mxu0 %v55
      %v148 = vpop.f32.mrb[0].mxu0
      %v149 = vadd.f32 %v45, %v148
      %v150 = vpop.f32.mrb[0].mxu0
      %151 = vmatprep.mubr.f32.mxu0 0.0
      %152 = vmatmul.mubr.f32.gmra.mrb[0].mxu0 %v58
      %v153 = vpop.f32.mrb[0].mxu0
      %v154 = vadd.f32 %v45, %v153
      %v155 = vpop.f32.mrb[0].mxu0
      %156 = vmatprep.mubr.f32.mxu0 0.0
      %157 = vmatmul.mubr.f32.gmra.mrb[0].mxu0 %v61
      %v158 = vpop.f32.mrb[0].mxu0
      %v159 = vadd.f32 %v45, %v158
      %v160 = vpop.f32.mrb[0].mxu0
      %161 = vmatprep.mubr.f32.mxu0 0.0
      %162 = vmatmul.mubr.f32.gmra.mrb[0].mxu0 %v64
      %v163 = vpop.f32.mrb[0].mxu0
      %v164 = vadd.f32 %v45, %v163
      %v165 = vpop.f32.mrb[0].mxu0
      %166 = vmatprep.mubr.f32.mxu0 0.0
      %167 = vmatmul.mubr.f32.gmra.mrb[0].mxu0 %v67
      %v168 = vpop.f32.mrb[0].mxu0
      %v169 = vadd.f32 %v45, %v168
      %v170 = vpop.f32.mrb[0].mxu0
      %171 = vmatprep.mubr.f32.mxu0 0.0
      %172 = vmatmul.mubr.f32.gmra.mrb[0].mxu0 %v70
      %v173 = vpop.f32.mrb[0].mxu0
      %v174 = vadd.f32 %v45, %v173
      %v175 = vpop.f32.mrb[0].mxu0
      %176 = vdwg.mxu0
      %177 = vst [vmem:[#allocation2] sm:$0xff] %v139
      %178 = vst [vmem:[#allocation2 + $0x8] sm:$0xff] %v144
      %179 = vst [vmem:[#allocation2 + $0x10] sm:$0xff] %v149
      %180 = vst [vmem:[#allocation2 + $0x18] sm:$0xff] %v154
      %181 = vst [vmem:[#allocation2 + $0x20] sm:$0xff] %v159
      %182 = vst [vmem:[#allocation2 + $0x28] sm:$0xff] %v164
      %183 = vst [vmem:[#allocation2 + $0x30] sm:$0xff] %v169
      %184 = vst [vmem:[#allocation2 + $0x38] sm:$0xff] %v174
      %v185 = vld [vmem:[%s2] sm:$0xff]
      %v186 = vld [vmem:[%s2 + $0x8] sm:$0xff]
      %v187 = vld [vmem:[%s2 + $0x10] sm:$0xff]
      %v188 = vld [vmem:[%s2 + $0x18] sm:$0xff]
      %v189 = vlaneseq
      %v190 = vand.u32 %v189, 127
      %vm191 = vcmp.ge.s32.totalorder %v190, 64
      %vm192 = vcmp.lt.s32.totalorder %v190, 96
      %vm193 = vmand %vm191, %vm192
      %v194 = vld [vmem:[#allocation2] sm:$0xff]
      %v196 = vsel %vm47, 0.0, 0
      %198 = vmatprep.subr.mxu0 0.0
      %199 = vmatpush1.msra.mxu0 %v185
      %200 = vmatprep.subr.mxu0 0.0
      %201 = vmatpush1.msra.mxu0 %v186
      %202 = vmatprep.subr.mxu0 0.0
      %203 = vmatpush1.msra.mxu0 %v187
      %204 = vmatprep.subr.mxu0 0.0
      %205 = vmatpush1.msra.mxu0 %v188
      %206 = vmatprep.subr.mxu0 0.0
      %207 = vmatpush1.msra.mxu0 0.0
      %208 = vmatprep.subr.mxu0 0.0
      %209 = vmatpush1.msra.mxu0 0.0
      %210 = vmatprep.subr.mxu0 0.0
      %211 = vmatpush1.msra.mxu0 0.0
      %212 = vmatprep.subr.mxu0 0.0
      %213 = vmatpush1.msra.mxu0 0.0
      %214 = vmatprep.subr.mxu0 0.0
      %215 = vmatpush1.msra.mxu0 0.0
      %216 = vmatprep.subr.mxu0 0.0
      %217 = vmatpush1.msra.mxu0 0.0
      %218 = vmatprep.subr.mxu0 0.0
      %219 = vmatpush1.msra.mxu0 0.0
      %220 = vmatprep.subr.mxu0 0.0
      %221 = vmatpush1.msra.mxu0 0.0
      %222 = vmatprep.subr.mxu0 0.0
      %223 = vmatpush1.msra.mxu0 0.0
      %224 = vmatprep.subr.mxu0 0.0
      %225 = vmatpush1.msra.mxu0 0.0
      %226 = vmatprep.subr.mxu0 0.0
      %227 = vmatpush1.msra.mxu0 0.0
      %228 = vmatprep.subr.mxu0 0.0
      %229 = vmatpush1.msra.mxu0 0.0
      %230 = vmatprep.subr.mxu0 0.0
      %231 = vmatpush1.msra.mxu0 0.0
      %232 = vmatprep.subr.mxu0 0.0
      %233 = vmatpush1.msra.mxu0 0.0
      %234 = vmatprep.subr.mxu0 0.0
      %235 = vmatpush1.msra.mxu0 0.0
      %236 = vmatprep.subr.mxu0 0.0
      %237 = vmatpush1.msra.mxu0 0.0
      %238 = vmatprep.subr.mxu0 0.0
      %239 = vmatpush1.msra.mxu0 0.0
      %240 = vmatprep.subr.mxu0 0.0
      %241 = vmatpush1.msra.mxu0 0.0
      %242 = vmatprep.subr.mxu0 0.0
      %243 = vmatpush1.msra.mxu0 0.0
      %244 = vmatprep.subr.mxu0 0.0
      %245 = vmatpush1.msra.mxu0 0.0
      %246 = vmatprep.subr.mxu0 0.0
      %247 = vmatpush1.msra.mxu0 0.0
      %248 = vmatprep.subr.mxu0 0.0
      %249 = vmatpush1.msra.mxu0 0.0
      %250 = vmatprep.subr.mxu0 0.0
      %251 = vmatpush1.msra.mxu0 0.0
      %252 = vmatprep.subr.mxu0 0.0
      %253 = vmatpush1.msra.mxu0 0.0
      %254 = vmatprep.subr.mxu0 0.0
      %255 = vmatpush1.msra.mxu0 0.0
      %256 = vmatprep.subr.mxu0 0.0
      %257 = vmatpush1.msra.mxu0 0.0
      %258 = vmatprep.subr.mxu0 0.0
      %259 = vmatpush1.msra.mxu0 0.0
      %260 = vmatprep.subr.mxu0 0.0
      %261 = vmatpush1.msra.mxu0 0.0
      %262 = vmatprep.mubr.f32.mxu0 0.0
      %263 = vmatmul.mubr.f32.gmra.mrb[0].mxu0 %v196
      %v264 = vpop.f32.mrb[0].mxu0
      %v265 = vadd.f32 0.0, %v264
      %v266 = vpop.f32.mrb[0].mxu0
      %267 = vdwg.mxu0
      %v268 = vadd.f32 %v194, %v265
      %v269 = vxor.u32 %v268, 2147483648
      %v270 = vmul.f32 %v269, 1.442695
      %v271 = vpow.pop %v270
      %v272 = vadd.f32 %v271, 1.0
      %v273 = vrcp.pop %v272
      %v274 = vmul.f32 1.0, %v273
      %v275 = vtanh.pop %v268
      %v276 = vsel %vm193, %v275, %v274
      %v277 = vmul.f32 %v276, 0.0
      %279 = vrot.lane.b32.xlu0 %v276, 64
      %v280 = vpop.permute.xlu0 %279
      %v282 = vmul.f32 %v276, %v280
      %284 = vrot.lane.b32.xlu0 %v282, 32
      %v285 = vpop.permute.xlu0 %284
      %v287 = vadd.f32 %v277, %v285
      %v288 = vtanh.pop %v287
      %290 = vrot.lane.b32.xlu0 %v288, 64
      %v291 = vpop.permute.xlu0 %290
      %v293 = vmul.f32 %v276, %v291
      %295 = vrot.lane.b32.xlu0 %v293, 32
      %v296 = vpop.permute.xlu0 %295
      %298 = vst.msk [vmem:[#allocation3] sm:$0xff] %vm47, %v296
      %s299 = scalar_lea.vmem [#allocation2], 8
      %v300 = vld [vmem:[%s299] sm:$0xff]
      %v301 = vsel %vm47, %v296, 0
      %303 = vmatprep.subr.mxu0 0.0
      %304 = vmatpush1.msra.mxu0 %v185
      %305 = vmatprep.subr.mxu0 0.0
      %306 = vmatpush1.msra.mxu0 %v186
      %307 = vmatprep.subr.mxu0 0.0
      %308 = vmatpush1.msra.mxu0 %v187
      %309 = vmatprep.subr.mxu0 0.0
      %310 = vmatpush1.msra.mxu0 %v188
      %311 = vmatprep.subr.mxu0 0.0
      %312 = vmatpush1.msra.mxu0 0.0
      %313 = vmatprep.subr.mxu0 0.0
      %314 = vmatpush1.msra.mxu0 0.0
      %315 = vmatprep.subr.mxu0 0.0
      %316 = vmatpush1.msra.mxu0 0.0
      %317 = vmatprep.subr.mxu0 0.0
      %318 = vmatpush1.msra.mxu0 0.0
      %319 = vmatprep.subr.mxu0 0.0
      %320 = vmatpush1.msra.mxu0 0.0
      %321 = vmatprep.subr.mxu0 0.0
      %322 = vmatpush1.msra.mxu0 0.0
      %323 = vmatprep.subr.mxu0 0.0
      %324 = vmatpush1.msra.mxu0 0.0
      %325 = vmatprep.subr.mxu0 0.0
      %326 = vmatpush1.msra.mxu0 0.0
      %327 = vmatprep.subr.mxu0 0.0
      %328 = vmatpush1.msra.mxu0 0.0
      %329 = vmatprep.subr.mxu0 0.0
      %330 = vmatpush1.msra.mxu0 0.0
      %331 = vmatprep.subr.mxu0 0.0
      %332 = vmatpush1.msra.mxu0 0.0
      %333 = vmatprep.subr.mxu0 0.0
      %334 = vmatpush1.msra.mxu0 0.0
      %335 = vmatprep.subr.mxu0 0.0
      %336 = vmatpush1.msra.mxu0 0.0
      %337 = vmatprep.subr.mxu0 0.0
      %338 = vmatpush1.msra.mxu0 0.0
      %339 = vmatprep.subr.mxu0 0.0
      %340 = vmatpush1.msra.mxu0 0.0
      %341 = vmatprep.subr.mxu0 0.0
      %342 = vmatpush1.msra.mxu0 0.0
      %343 = vmatprep.subr.mxu0 0.0
      %344 = vmatpush1.msra.mxu0 0.0
      %345 = vmatprep.subr.mxu0 0.0
      %346 = vmatpush1.msra.mxu0 0.0
      %347 = vmatprep.subr.mxu0 0.0
      %348 = vmatpush1.msra.mxu0 0.0
      %349 = vmatprep.subr.mxu0 0.0
      %350 = vmatpush1.msra.mxu0 0.0
      %351 = vmatprep.subr.mxu0 0.0
      %352 = vmatpush1.msra.mxu0 0.0
      %353 = vmatprep.subr.mxu0 0.0
      %354 = vmatpush1.msra.mxu0 0.0
      %355 = vmatprep.subr.mxu0 0.0
      %356 = vmatpush1.msra.mxu0 0.0
      %357 = vmatprep.subr.mxu0 0.0
      %358 = vmatpush1.msra.mxu0 0.0
      %359 = vmatprep.subr.mxu0 0.0
      %360 = vmatpush1.msra.mxu0 0.0
      %361 = vmatprep.subr.mxu0 0.0
      %362 = vmatpush1.msra.mxu0 0.0
      %363 = vmatprep.subr.mxu0 0.0
      %364 = vmatpush1.msra.mxu0 0.0
      %365 = vmatprep.subr.mxu0 0.0
      %366 = vmatpush1.msra.mxu0 0.0
      %367 = vmatprep.mubr.f32.mxu0 0.0
      %368 = vmatmul.mubr.f32.gmra.mrb[0].mxu0 %v301
      %v369 = vpop.f32.mrb[0].mxu0
      %v370 = vadd.f32 0.0, %v369
      %v371 = vpop.f32.mrb[0].mxu0
      %372 = vdwg.mxu0
      %v373 = vadd.f32 %v300, %v370
      %v374 = vxor.u32 %v373, 2147483648
      %v375 = vmul.f32 %v374, 1.442695
      %v376 = vpow.pop %v375
      %v377 = vadd.f32 %v376, 1.0
      %v378 = vrcp.pop %v377
      %v379 = vmul.f32 1.0, %v378
      %v380 = vtanh.pop %v373
      %v381 = vsel %vm193, %v380, %v379
      %v382 = vmul.f32 %v381, %v287
      %384 = vrot.lane.b32.xlu0 %v381, 64
      %v385 = vpop.permute.xlu0 %384
      %v387 = vmul.f32 %v381, %v385
      %389 = vrot.lane.b32.xlu0 %v387, 32
      %v390 = vpop.permute.xlu0 %389
      %v392 = vadd.f32 %v382, %v390
      %v393 = vtanh.pop %v392
      %395 = vrot.lane.b32.xlu0 %v393, 64
      %v396 = vpop.permute.xlu0 %395
      %v398 = vmul.f32 %v381, %v396
      %400 = vrot.lane.b32.xlu0 %v398, 32
      %v401 = vpop.permute.xlu0 %400
      %s403 = scalar_lea.vmem [#allocation3], 8
      %404 = vst.msk [vmem:[%s403] sm:$0xff] %vm47, %v401
      %s405 = scalar_lea.vmem [#allocation2], 16
      %v406 = vld [vmem:[%s405] sm:$0xff]
      %v407 = vsel %vm47, %v401, 0
      %409 = vmatprep.subr.mxu0 0.0
      %410 = vmatpush1.msra.mxu0 %v185
      %411 = vmatprep.subr.mxu0 0.0
      %412 = vmatpush1.msra.mxu0 %v186
      %413 = vmatprep.subr.mxu0 0.0
      %414 = vmatpush1.msra.mxu0 %v187
      %415 = vmatprep.subr.mxu0 0.0
      %416 = vmatpush1.msra.mxu0 %v188
      %417 = vmatprep.subr.mxu0 0.0
      %418 = vmatpush1.msra.mxu0 0.0
      %419 = vmatprep.subr.mxu0 0.0
      %420 = vmatpush1.msra.mxu0 0.0
      %421 = vmatprep.subr.mxu0 0.0
      %422 = vmatpush1.msra.mxu0 0.0
      %423 = vmatprep.subr.mxu0 0.0
      %424 = vmatpush1.msra.mxu0 0.0
      %425 = vmatprep.subr.mxu0 0.0
      %426 = vmatpush1.msra.mxu0 0.0
      %427 = vmatprep.subr.mxu0 0.0
      %428 = vmatpush1.msra.mxu0 0.0
      %429 = vmatprep.subr.mxu0 0.0
      %430 = vmatpush1.msra.mxu0 0.0
      %431 = vmatprep.subr.mxu0 0.0
      %432 = vmatpush1.msra.mxu0 0.0
      %433 = vmatprep.subr.mxu0 0.0
      %434 = vmatpush1.msra.mxu0 0.0
      %435 = vmatprep.subr.mxu0 0.0
      %436 = vmatpush1.msra.mxu0 0.0
      %437 = vmatprep.subr.mxu0 0.0
      %438 = vmatpush1.msra.mxu0 0.0
      %439 = vmatprep.subr.mxu0 0.0
      %440 = vmatpush1.msra.mxu0 0.0
      %441 = vmatprep.subr.mxu0 0.0
      %442 = vmatpush1.msra.mxu0 0.0
      %443 = vmatprep.subr.mxu0 0.0
      %444 = vmatpush1.msra.mxu0 0.0
      %445 = vmatprep.subr.mxu0 0.0
      %446 = vmatpush1.msra.mxu0 0.0
      %447 = vmatprep.subr.mxu0 0.0
      %448 = vmatpush1.msra.mxu0 0.0
      %449 = vmatprep.subr.mxu0 0.0
      %450 = vmatpush1.msra.mxu0 0.0
      %451 = vmatprep.subr.mxu0 0.0
      %452 = vmatpush1.msra.mxu0 0.0
      %453 = vmatprep.subr.mxu0 0.0
      %454 = vmatpush1.msra.mxu0 0.0
      %455 = vmatprep.subr.mxu0 0.0
      %456 = vmatpush1.msra.mxu0 0.0
      %457 = vmatprep.subr.mxu0 0.0
      %458 = vmatpush1.msra.mxu0 0.0
      %459 = vmatprep.subr.mxu0 0.0
      %460 = vmatpush1.msra.mxu0 0.0
      %461 = vmatprep.subr.mxu0 0.0
      %462 = vmatpush1.msra.mxu0 0.0
      %463 = vmatprep.subr.mxu0 0.0
      %464 = vmatpush1.msra.mxu0 0.0
      %465 = vmatprep.subr.mxu0 0.0
      %466 = vmatpush1.msra.mxu0 0.0
      %467 = vmatprep.subr.mxu0 0.0
      %468 = vmatpush1.msra.mxu0 0.0
      %469 = vmatprep.subr.mxu0 0.0
      %470 = vmatpush1.msra.mxu0 0.0
      %471 = vmatprep.subr.mxu0 0.0
      %472 = vmatpush1.msra.mxu0 0.0
      %473 = vmatprep.mubr.f32.mxu0 0.0
      %474 = vmatmul.mubr.f32.gmra.mrb[0].mxu0 %v407
      %v475 = vpop.f32.mrb[0].mxu0
      %v476 = vadd.f32 0.0, %v475
      %v477 = vpop.f32.mrb[0].mxu0
      %478 = vdwg.mxu0
      %v479 = vadd.f32 %v406, %v476
      %v480 = vxor.u32 %v479, 2147483648
      %v481 = vmul.f32 %v480, 1.442695
      %v482 = vpow.pop %v481
      %v483 = vadd.f32 %v482, 1.0
      %v484 = vrcp.pop %v483
      %v485 = vmul.f32 1.0, %v484
      %v486 = vtanh.pop %v479
      %v487 = vsel %vm193, %v486, %v485
      %v488 = vmul.f32 %v487, %v392
      %490 = vrot.lane.b32.xlu0 %v487, 64
      %v491 = vpop.permute.xlu0 %490
      %v493 = vmul.f32 %v487, %v491
      %495 = vrot.lane.b32.xlu0 %v493, 32
      %v496 = vpop.permute.xlu0 %495
      %v498 = vadd.f32 %v488, %v496
      %v499 = vtanh.pop %v498
      %501 = vrot.lane.b32.xlu0 %v499, 64
      %v502 = vpop.permute.xlu0 %501
      %v504 = vmul.f32 %v487, %v502
      %506 = vrot.lane.b32.xlu0 %v504, 32
      %v507 = vpop.permute.xlu0 %506
      %s509 = scalar_lea.vmem [#allocation3], 16
      %510 = vst.msk [vmem:[%s509] sm:$0xff] %vm47, %v507
      %s511 = scalar_lea.vmem [#allocation2], 24
      %v512 = vld [vmem:[%s511] sm:$0xff]
      %v513 = vsel %vm47, %v507, 0
      %515 = vmatprep.subr.mxu0 0.0
      %516 = vmatpush1.msra.mxu0 %v185
      %517 = vmatprep.subr.mxu0 0.0
      %518 = vmatpush1.msra.mxu0 %v186
      %519 = vmatprep.subr.mxu0 0.0
      %520 = vmatpush1.msra.mxu0 %v187
      %521 = vmatprep.subr.mxu0 0.0
      %522 = vmatpush1.msra.mxu0 %v188
      %523 = vmatprep.subr.mxu0 0.0
      %524 = vmatpush1.msra.mxu0 0.0
      %525 = vmatprep.subr.mxu0 0.0
      %526 = vmatpush1.msra.mxu0 0.0
      %527 = vmatprep.subr.mxu0 0.0
      %528 = vmatpush1.msra.mxu0 0.0
      %529 = vmatprep.subr.mxu0 0.0
      %530 = vmatpush1.msra.mxu0 0.0
      %531 = vmatprep.subr.mxu0 0.0
      %532 = vmatpush1.msra.mxu0 0.0
      %533 = vmatprep.subr.mxu0 0.0
      %534 = vmatpush1.msra.mxu0 0.0
      %535 = vmatprep.subr.mxu0 0.0
      %536 = vmatpush1.msra.mxu0 0.0
      %537 = vmatprep.subr.mxu0 0.0
      %538 = vmatpush1.msra.mxu0 0.0
      %539 = vmatprep.subr.mxu0 0.0
      %540 = vmatpush1.msra.mxu0 0.0
      %541 = vmatprep.subr.mxu0 0.0
      %542 = vmatpush1.msra.mxu0 0.0
      %543 = vmatprep.subr.mxu0 0.0
      %544 = vmatpush1.msra.mxu0 0.0
      %545 = vmatprep.subr.mxu0 0.0
      %546 = vmatpush1.msra.mxu0 0.0
      %547 = vmatprep.subr.mxu0 0.0
      %548 = vmatpush1.msra.mxu0 0.0
      %549 = vmatprep.subr.mxu0 0.0
      %550 = vmatpush1.msra.mxu0 0.0
      %551 = vmatprep.subr.mxu0 0.0
      %552 = vmatpush1.msra.mxu0 0.0
      %553 = vmatprep.subr.mxu0 0.0
      %554 = vmatpush1.msra.mxu0 0.0
      %555 = vmatprep.subr.mxu0 0.0
      %556 = vmatpush1.msra.mxu0 0.0
      %557 = vmatprep.subr.mxu0 0.0
      %558 = vmatpush1.msra.mxu0 0.0
      %559 = vmatprep.subr.mxu0 0.0
      %560 = vmatpush1.msra.mxu0 0.0
      %561 = vmatprep.subr.mxu0 0.0
      %562 = vmatpush1.msra.mxu0 0.0
      %563 = vmatprep.subr.mxu0 0.0
      %564 = vmatpush1.msra.mxu0 0.0
      %565 = vmatprep.subr.mxu0 0.0
      %566 = vmatpush1.msra.mxu0 0.0
      %567 = vmatprep.subr.mxu0 0.0
      %568 = vmatpush1.msra.mxu0 0.0
      %569 = vmatprep.subr.mxu0 0.0
      %570 = vmatpush1.msra.mxu0 0.0
      %571 = vmatprep.subr.mxu0 0.0
      %572 = vmatpush1.msra.mxu0 0.0
      %573 = vmatprep.subr.mxu0 0.0
      %574 = vmatpush1.msra.mxu0 0.0
      %575 = vmatprep.subr.mxu0 0.0
      %576 = vmatpush1.msra.mxu0 0.0
      %577 = vmatprep.subr.mxu0 0.0
      %578 = vmatpush1.msra.mxu0 0.0
      %579 = vmatprep.mubr.f32.mxu0 0.0
      %580 = vmatmul.mubr.f32.gmra.mrb[0].mxu0 %v513
      %v581 = vpop.f32.mrb[0].mxu0
      %v582 = vadd.f32 0.0, %v581
      %v583 = vpop.f32.mrb[0].mxu0
      %584 = vdwg.mxu0
      %v585 = vadd.f32 %v512, %v582
      %v586 = vxor.u32 %v585, 2147483648
      %v587 = vmul.f32 %v586, 1.442695
      %v588 = vpow.pop %v587
      %v589 = vadd.f32 %v588, 1.0
      %v590 = vrcp.pop %v589
      %v591 = vmul.f32 1.0, %v590
      %v592 = vtanh.pop %v585
      %v593 = vsel %vm193, %v592, %v591
      %v594 = vmul.f32 %v593, %v498
      %596 = vrot.lane.b32.xlu0 %v593, 64
      %v597 = vpop.permute.xlu0 %596
      %v599 = vmul.f32 %v593, %v597
      %601 = vrot.lane.b32.xlu0 %v599, 32
      %v602 = vpop.permute.xlu0 %601
      %v604 = vadd.f32 %v594, %v602
      %v605 = vtanh.pop %v604
      %607 = vrot.lane.b32.xlu0 %v605, 64
      %v608 = vpop.permute.xlu0 %607
      %v610 = vmul.f32 %v593, %v608
      %612 = vrot.lane.b32.xlu0 %v610, 32
      %v613 = vpop.permute.xlu0 %612
      %s615 = scalar_lea.vmem [#allocation3], 24
      %616 = vst.msk [vmem:[%s615] sm:$0xff] %vm47, %v613
      %s617 = scalar_lea.vmem [#allocation2], 32
      %v618 = vld [vmem:[%s617] sm:$0xff]
      %v619 = vsel %vm47, %v613, 0
      %621 = vmatprep.subr.mxu0 0.0
      %622 = vmatpush1.msra.mxu0 %v185
      %623 = vmatprep.subr.mxu0 0.0
      %624 = vmatpush1.msra.mxu0 %v186
      %625 = vmatprep.subr.mxu0 0.0
      %626 = vmatpush1.msra.mxu0 %v187
      %627 = vmatprep.subr.mxu0 0.0
      %628 = vmatpush1.msra.mxu0 %v188
      %629 = vmatprep.subr.mxu0 0.0
      %630 = vmatpush1.msra.mxu0 0.0
      %631 = vmatprep.subr.mxu0 0.0
      %632 = vmatpush1.msra.mxu0 0.0
      %633 = vmatprep.subr.mxu0 0.0
      %634 = vmatpush1.msra.mxu0 0.0
      %635 = vmatprep.subr.mxu0 0.0
      %636 = vmatpush1.msra.mxu0 0.0
      %637 = vmatprep.subr.mxu0 0.0
      %638 = vmatpush1.msra.mxu0 0.0
      %639 = vmatprep.subr.mxu0 0.0
      %640 = vmatpush1.msra.mxu0 0.0
      %641 = vmatprep.subr.mxu0 0.0
      %642 = vmatpush1.msra.mxu0 0.0
      %643 = vmatprep.subr.mxu0 0.0
      %644 = vmatpush1.msra.mxu0 0.0
      %645 = vmatprep.subr.mxu0 0.0
      %646 = vmatpush1.msra.mxu0 0.0
      %647 = vmatprep.subr.mxu0 0.0
      %648 = vmatpush1.msra.mxu0 0.0
      %649 = vmatprep.subr.mxu0 0.0
      %650 = vmatpush1.msra.mxu0 0.0
      %651 = vmatprep.subr.mxu0 0.0
      %652 = vmatpush1.msra.mxu0 0.0
      %653 = vmatprep.subr.mxu0 0.0
      %654 = vmatpush1.msra.mxu0 0.0
      %655 = vmatprep.subr.mxu0 0.0
      %656 = vmatpush1.msra.mxu0 0.0
      %657 = vmatprep.subr.mxu0 0.0
      %658 = vmatpush1.msra.mxu0 0.0
      %659 = vmatprep.subr.mxu0 0.0
      %660 = vmatpush1.msra.mxu0 0.0
      %661 = vmatprep.subr.mxu0 0.0
      %662 = vmatpush1.msra.mxu0 0.0
      %663 = vmatprep.subr.mxu0 0.0
      %664 = vmatpush1.msra.mxu0 0.0
      %665 = vmatprep.subr.mxu0 0.0
      %666 = vmatpush1.msra.mxu0 0.0
      %667 = vmatprep.subr.mxu0 0.0
      %668 = vmatpush1.msra.mxu0 0.0
      %669 = vmatprep.subr.mxu0 0.0
      %670 = vmatpush1.msra.mxu0 0.0
      %671 = vmatprep.subr.mxu0 0.0
      %672 = vmatpush1.msra.mxu0 0.0
      %673 = vmatprep.subr.mxu0 0.0
      %674 = vmatpush1.msra.mxu0 0.0
      %675 = vmatprep.subr.mxu0 0.0
      %676 = vmatpush1.msra.mxu0 0.0
      %677 = vmatprep.subr.mxu0 0.0
      %678 = vmatpush1.msra.mxu0 0.0
      %679 = vmatprep.subr.mxu0 0.0
      %680 = vmatpush1.msra.mxu0 0.0
      %681 = vmatprep.subr.mxu0 0.0
      %682 = vmatpush1.msra.mxu0 0.0
      %683 = vmatprep.subr.mxu0 0.0
      %684 = vmatpush1.msra.mxu0 0.0
      %685 = vmatprep.mubr.f32.mxu0 0.0
      %686 = vmatmul.mubr.f32.gmra.mrb[0].mxu0 %v619
      %v687 = vpop.f32.mrb[0].mxu0
      %v688 = vadd.f32 0.0, %v687
      %v689 = vpop.f32.mrb[0].mxu0
      %690 = vdwg.mxu0
      %v691 = vadd.f32 %v618, %v688
      %v692 = vxor.u32 %v691, 2147483648
      %v693 = vmul.f32 %v692, 1.442695
      %v694 = vpow.pop %v693
      %v695 = vadd.f32 %v694, 1.0
      %v696 = vrcp.pop %v695
      %v697 = vmul.f32 1.0, %v696
      %v698 = vtanh.pop %v691
      %v699 = vsel %vm193, %v698, %v697
      %v700 = vmul.f32 %v699, %v604
      %702 = vrot.lane.b32.xlu0 %v699, 64
      %v703 = vpop.permute.xlu0 %702
      %v705 = vmul.f32 %v699, %v703
      %707 = vrot.lane.b32.xlu0 %v705, 32
      %v708 = vpop.permute.xlu0 %707
      %v710 = vadd.f32 %v700, %v708
      %v711 = vtanh.pop %v710
      %713 = vrot.lane.b32.xlu0 %v711, 64
      %v714 = vpop.permute.xlu0 %713
      %v716 = vmul.f32 %v699, %v714
      %718 = vrot.lane.b32.xlu0 %v716, 32
      %v719 = vpop.permute.xlu0 %718
      %s721 = scalar_lea.vmem [#allocation3], 32
      %722 = vst.msk [vmem:[%s721] sm:$0xff] %vm47, %v719
      %s723 = scalar_lea.vmem [#allocation2], 40
      %v724 = vld [vmem:[%s723] sm:$0xff]
      %v725 = vsel %vm47, %v719, 0
      %727 = vmatprep.subr.mxu0 0.0
      %728 = vmatpush1.msra.mxu0 %v185
      %729 = vmatprep.subr.mxu0 0.0
      %730 = vmatpush1.msra.mxu0 %v186
      %731 = vmatprep.subr.mxu0 0.0
      %732 = vmatpush1.msra.mxu0 %v187
      %733 = vmatprep.subr.mxu0 0.0
      %734 = vmatpush1.msra.mxu0 %v188
      %735 = vmatprep.subr.mxu0 0.0
      %736 = vmatpush1.msra.mxu0 0.0
      %737 = vmatprep.subr.mxu0 0.0
      %738 = vmatpush1.msra.mxu0 0.0
      %739 = vmatprep.subr.mxu0 0.0
      %740 = vmatpush1.msra.mxu0 0.0
      %741 = vmatprep.subr.mxu0 0.0
      %742 = vmatpush1.msra.mxu0 0.0
      %743 = vmatprep.subr.mxu0 0.0
      %744 = vmatpush1.msra.mxu0 0.0
      %745 = vmatprep.subr.mxu0 0.0
      %746 = vmatpush1.msra.mxu0 0.0
      %747 = vmatprep.subr.mxu0 0.0
      %748 = vmatpush1.msra.mxu0 0.0
      %749 = vmatprep.subr.mxu0 0.0
      %750 = vmatpush1.msra.mxu0 0.0
      %751 = vmatprep.subr.mxu0 0.0
      %752 = vmatpush1.msra.mxu0 0.0
      %753 = vmatprep.subr.mxu0 0.0
      %754 = vmatpush1.msra.mxu0 0.0
      %755 = vmatprep.subr.mxu0 0.0
      %756 = vmatpush1.msra.mxu0 0.0
      %757 = vmatprep.subr.mxu0 0.0
      %758 = vmatpush1.msra.mxu0 0.0
      %759 = vmatprep.subr.mxu0 0.0
      %760 = vmatpush1.msra.mxu0 0.0
      %761 = vmatprep.subr.mxu0 0.0
      %762 = vmatpush1.msra.mxu0 0.0
      %763 = vmatprep.subr.mxu0 0.0
      %764 = vmatpush1.msra.mxu0 0.0
      %765 = vmatprep.subr.mxu0 0.0
      %766 = vmatpush1.msra.mxu0 0.0
      %767 = vmatprep.subr.mxu0 0.0
      %768 = vmatpush1.msra.mxu0 0.0
      %769 = vmatprep.subr.mxu0 0.0
      %770 = vmatpush1.msra.mxu0 0.0
      %771 = vmatprep.subr.mxu0 0.0
      %772 = vmatpush1.msra.mxu0 0.0
      %773 = vmatprep.subr.mxu0 0.0
      %774 = vmatpush1.msra.mxu0 0.0
      %775 = vmatprep.subr.mxu0 0.0
      %776 = vmatpush1.msra.mxu0 0.0
      %777 = vmatprep.subr.mxu0 0.0
      %778 = vmatpush1.msra.mxu0 0.0
      %779 = vmatprep.subr.mxu0 0.0
      %780 = vmatpush1.msra.mxu0 0.0
      %781 = vmatprep.subr.mxu0 0.0
      %782 = vmatpush1.msra.mxu0 0.0
      %783 = vmatprep.subr.mxu0 0.0
      %784 = vmatpush1.msra.mxu0 0.0
      %785 = vmatprep.subr.mxu0 0.0
      %786 = vmatpush1.msra.mxu0 0.0
      %787 = vmatprep.subr.mxu0 0.0
      %788 = vmatpush1.msra.mxu0 0.0
      %789 = vmatprep.subr.mxu0 0.0
      %790 = vmatpush1.msra.mxu0 0.0
      %791 = vmatprep.mubr.f32.mxu0 0.0
      %792 = vmatmul.mubr.f32.gmra.mrb[0].mxu0 %v725
      %v793 = vpop.f32.mrb[0].mxu0
      %v794 = vadd.f32 0.0, %v793
      %v795 = vpop.f32.mrb[0].mxu0
      %796 = vdwg.mxu0
      %v797 = vadd.f32 %v724, %v794
      %v798 = vxor.u32 %v797, 2147483648
      %v799 = vmul.f32 %v798, 1.442695
      %v800 = vpow.pop %v799
      %v801 = vadd.f32 %v800, 1.0
      %v802 = vrcp.pop %v801
      %v803 = vmul.f32 1.0, %v802
      %v804 = vtanh.pop %v797
      %v805 = vsel %vm193, %v804, %v803
      %v806 = vmul.f32 %v805, %v710
      %808 = vrot.lane.b32.xlu0 %v805, 64
      %v809 = vpop.permute.xlu0 %808
      %v811 = vmul.f32 %v805, %v809
      %813 = vrot.lane.b32.xlu0 %v811, 32
      %v814 = vpop.permute.xlu0 %813
      %v816 = vadd.f32 %v806, %v814
      %v817 = vtanh.pop %v816
      %819 = vrot.lane.b32.xlu0 %v817, 64
      %v820 = vpop.permute.xlu0 %819
      %v822 = vmul.f32 %v805, %v820
      %824 = vrot.lane.b32.xlu0 %v822, 32
      %v825 = vpop.permute.xlu0 %824
      %s827 = scalar_lea.vmem [#allocation3], 40
      %828 = vst.msk [vmem:[%s827] sm:$0xff] %vm47, %v825
      %s829 = scalar_lea.vmem [#allocation2], 48
      %v830 = vld [vmem:[%s829] sm:$0xff]
      %v831 = vsel %vm47, %v825, 0
      %833 = vmatprep.subr.mxu0 0.0
      %834 = vmatpush1.msra.mxu0 %v185
      %835 = vmatprep.subr.mxu0 0.0
      %836 = vmatpush1.msra.mxu0 %v186
      %837 = vmatprep.subr.mxu0 0.0
      %838 = vmatpush1.msra.mxu0 %v187
      %839 = vmatprep.subr.mxu0 0.0
      %840 = vmatpush1.msra.mxu0 %v188
      %841 = vmatprep.subr.mxu0 0.0
      %842 = vmatpush1.msra.mxu0 0.0
      %843 = vmatprep.subr.mxu0 0.0
      %844 = vmatpush1.msra.mxu0 0.0
      %845 = vmatprep.subr.mxu0 0.0
      %846 = vmatpush1.msra.mxu0 0.0
      %847 = vmatprep.subr.mxu0 0.0
      %848 = vmatpush1.msra.mxu0 0.0
      %849 = vmatprep.subr.mxu0 0.0
      %850 = vmatpush1.msra.mxu0 0.0
      %851 = vmatprep.subr.mxu0 0.0
      %852 = vmatpush1.msra.mxu0 0.0
      %853 = vmatprep.subr.mxu0 0.0
      %854 = vmatpush1.msra.mxu0 0.0
      %855 = vmatprep.subr.mxu0 0.0
      %856 = vmatpush1.msra.mxu0 0.0
      %857 = vmatprep.subr.mxu0 0.0
      %858 = vmatpush1.msra.mxu0 0.0
      %859 = vmatprep.subr.mxu0 0.0
      %860 = vmatpush1.msra.mxu0 0.0
      %861 = vmatprep.subr.mxu0 0.0
      %862 = vmatpush1.msra.mxu0 0.0
      %863 = vmatprep.subr.mxu0 0.0
      %864 = vmatpush1.msra.mxu0 0.0
      %865 = vmatprep.subr.mxu0 0.0
      %866 = vmatpush1.msra.mxu0 0.0
      %867 = vmatprep.subr.mxu0 0.0
      %868 = vmatpush1.msra.mxu0 0.0
      %869 = vmatprep.subr.mxu0 0.0
      %870 = vmatpush1.msra.mxu0 0.0
      %871 = vmatprep.subr.mxu0 0.0
      %872 = vmatpush1.msra.mxu0 0.0
      %873 = vmatprep.subr.mxu0 0.0
      %874 = vmatpush1.msra.mxu0 0.0
      %875 = vmatprep.subr.mxu0 0.0
      %876 = vmatpush1.msra.mxu0 0.0
      %877 = vmatprep.subr.mxu0 0.0
      %878 = vmatpush1.msra.mxu0 0.0
      %879 = vmatprep.subr.mxu0 0.0
      %880 = vmatpush1.msra.mxu0 0.0
      %881 = vmatprep.subr.mxu0 0.0
      %882 = vmatpush1.msra.mxu0 0.0
      %883 = vmatprep.subr.mxu0 0.0
      %884 = vmatpush1.msra.mxu0 0.0
      %885 = vmatprep.subr.mxu0 0.0
      %886 = vmatpush1.msra.mxu0 0.0
      %887 = vmatprep.subr.mxu0 0.0
      %888 = vmatpush1.msra.mxu0 0.0
      %889 = vmatprep.subr.mxu0 0.0
      %890 = vmatpush1.msra.mxu0 0.0
      %891 = vmatprep.subr.mxu0 0.0
      %892 = vmatpush1.msra.mxu0 0.0
      %893 = vmatprep.subr.mxu0 0.0
      %894 = vmatpush1.msra.mxu0 0.0
      %895 = vmatprep.subr.mxu0 0.0
      %896 = vmatpush1.msra.mxu0 0.0
      %897 = vmatprep.mubr.f32.mxu0 0.0
      %898 = vmatmul.mubr.f32.gmra.mrb[0].mxu0 %v831
      %v899 = vpop.f32.mrb[0].mxu0
      %v900 = vadd.f32 0.0, %v899
      %v901 = vpop.f32.mrb[0].mxu0
      %902 = vdwg.mxu0
      %v903 = vadd.f32 %v830, %v900
      %v904 = vxor.u32 %v903, 2147483648
      %v905 = vmul.f32 %v904, 1.442695
      %v906 = vpow.pop %v905
      %v907 = vadd.f32 %v906, 1.0
      %v908 = vrcp.pop %v907
      %v909 = vmul.f32 1.0, %v908
      %v910 = vtanh.pop %v903
      %v911 = vsel %vm193, %v910, %v909
      %v912 = vmul.f32 %v911, %v816
      %914 = vrot.lane.b32.xlu0 %v911, 64
      %v915 = vpop.permute.xlu0 %914
      %v917 = vmul.f32 %v911, %v915
      %919 = vrot.lane.b32.xlu0 %v917, 32
      %v920 = vpop.permute.xlu0 %919
      %v922 = vadd.f32 %v912, %v920
      %v923 = vtanh.pop %v922
      %925 = vrot.lane.b32.xlu0 %v923, 64
      %v926 = vpop.permute.xlu0 %925
      %v928 = vmul.f32 %v911, %v926
      %930 = vrot.lane.b32.xlu0 %v928, 32
      %v931 = vpop.permute.xlu0 %930
      %s933 = scalar_lea.vmem [#allocation3], 48
      %934 = vst.msk [vmem:[%s933] sm:$0xff] %vm47, %v931
      %s935 = scalar_lea.vmem [#allocation2], 56
      %v936 = vld [vmem:[%s935] sm:$0xff]
      %v937 = vsel %vm47, %v931, 0
      %939 = vmatprep.subr.mxu0 0.0
      %940 = vmatpush1.msra.mxu0 %v185
      %941 = vmatprep.subr.mxu0 0.0
      %942 = vmatpush1.msra.mxu0 %v186
      %943 = vmatprep.subr.mxu0 0.0
      %944 = vmatpush1.msra.mxu0 %v187
      %945 = vmatprep.subr.mxu0 0.0
      %946 = vmatpush1.msra.mxu0 %v188
      %947 = vmatprep.subr.mxu0 0.0
      %948 = vmatpush1.msra.mxu0 0.0
      %949 = vmatprep.subr.mxu0 0.0
      %950 = vmatpush1.msra.mxu0 0.0
      %951 = vmatprep.subr.mxu0 0.0
      %952 = vmatpush1.msra.mxu0 0.0
      %953 = vmatprep.subr.mxu0 0.0
      %954 = vmatpush1.msra.mxu0 0.0
      %955 = vmatprep.subr.mxu0 0.0
      %956 = vmatpush1.msra.mxu0 0.0
      %957 = vmatprep.subr.mxu0 0.0
      %958 = vmatpush1.msra.mxu0 0.0
      %959 = vmatprep.subr.mxu0 0.0
      %960 = vmatpush1.msra.mxu0 0.0
      %961 = vmatprep.subr.mxu0 0.0
      %962 = vmatpush1.msra.mxu0 0.0
      %963 = vmatprep.subr.mxu0 0.0
      %964 = vmatpush1.msra.mxu0 0.0
      %965 = vmatprep.subr.mxu0 0.0
      %966 = vmatpush1.msra.mxu0 0.0
      %967 = vmatprep.subr.mxu0 0.0
      %968 = vmatpush1.msra.mxu0 0.0
      %969 = vmatprep.subr.mxu0 0.0
      %970 = vmatpush1.msra.mxu0 0.0
      %971 = vmatprep.subr.mxu0 0.0
      %972 = vmatpush1.msra.mxu0 0.0
      %973 = vmatprep.subr.mxu0 0.0
      %974 = vmatpush1.msra.mxu0 0.0
      %975 = vmatprep.subr.mxu0 0.0
      %976 = vmatpush1.msra.mxu0 0.0
      %977 = vmatprep.subr.mxu0 0.0
      %978 = vmatpush1.msra.mxu0 0.0
      %979 = vmatprep.subr.mxu0 0.0
      %980 = vmatpush1.msra.mxu0 0.0
      %981 = vmatprep.subr.mxu0 0.0
      %982 = vmatpush1.msra.mxu0 0.0
      %983 = vmatprep.subr.mxu0 0.0
      %984 = vmatpush1.msra.mxu0 0.0
      %985 = vmatprep.subr.mxu0 0.0
      %986 = vmatpush1.msra.mxu0 0.0
      %987 = vmatprep.subr.mxu0 0.0
      %988 = vmatpush1.msra.mxu0 0.0
      %989 = vmatprep.subr.mxu0 0.0
      %990 = vmatpush1.msra.mxu0 0.0
      %991 = vmatprep.subr.mxu0 0.0
      %992 = vmatpush1.msra.mxu0 0.0
      %993 = vmatprep.subr.mxu0 0.0
      %994 = vmatpush1.msra.mxu0 0.0
      %995 = vmatprep.subr.mxu0 0.0
      %996 = vmatpush1.msra.mxu0 0.0
      %997 = vmatprep.subr.mxu0 0.0
      %998 = vmatpush1.msra.mxu0 0.0
      %999 = vmatprep.subr.mxu0 0.0
      %1000 = vmatpush1.msra.mxu0 0.0
      %1001 = vmatprep.subr.mxu0 0.0
      %1002 = vmatpush1.msra.mxu0 0.0
      %1003 = vmatprep.mubr.f32.mxu0 0.0
      %1004 = vmatmul.mubr.f32.gmra.mrb[0].mxu0 %v937
      %v1005 = vpop.f32.mrb[0].mxu0
      %v1006 = vadd.f32 0.0, %v1005
      %v1007 = vpop.f32.mrb[0].mxu0
      %1008 = vdwg.mxu0
      %v1009 = vadd.f32 %v936, %v1006
      %v1010 = vxor.u32 %v1009, 2147483648
      %v1011 = vmul.f32 %v1010, 1.442695
      %v1012 = vpow.pop %v1011
      %v1013 = vadd.f32 %v1012, 1.0
      %v1014 = vrcp.pop %v1013
      %v1015 = vmul.f32 1.0, %v1014
      %v1016 = vtanh.pop %v1009
      %v1017 = vsel %vm193, %v1016, %v1015
      %v1018 = vmul.f32 %v1017, %v922
      %1020 = vrot.lane.b32.xlu0 %v1017, 64
      %v1021 = vpop.permute.xlu0 %1020
      %v1023 = vmul.f32 %v1017, %v1021
      %1025 = vrot.lane.b32.xlu0 %v1023, 32
      %v1026 = vpop.permute.xlu0 %1025
      %v1028 = vadd.f32 %v1018, %v1026
      %v1029 = vtanh.pop %v1028
      %1031 = vrot.lane.b32.xlu0 %v1029, 64
      %v1032 = vpop.permute.xlu0 %1031
      %v1034 = vmul.f32 %v1017, %v1032
      %1036 = vrot.lane.b32.xlu0 %v1034, 32
      %v1037 = vpop.permute.xlu0 %1036
      %s1039 = scalar_lea.vmem [#allocation3], 56
      %1040 = vst.msk [vmem:[%s1039] sm:$0xff] %vm47, %v1037
      %v1041 = vld [vmem:[#allocation3] sm:$0x1]
      %v1042 = vld [vmem:[#allocation3 + $0x8] sm:$0x1]
      %v1043 = vld [vmem:[#allocation3 + $0x10] sm:$0x1]
      %v1044 = vld [vmem:[#allocation3 + $0x18] sm:$0x1]
      %v1045 = vld [vmem:[#allocation3 + $0x20] sm:$0x1]
      %v1046 = vld [vmem:[#allocation3 + $0x28] sm:$0x1]
      %v1047 = vld [vmem:[#allocation3 + $0x30] sm:$0x1]
      %v1048 = vld [vmem:[#allocation3 + $0x38] sm:$0x1]
      %v1057 = vrot.slane %v1042, 7
      %vm1058 = vcmask 1041409
      %v1059 = vsel %vm1058, %v1057, %v1041
      %v1060 = vrot.slane %v1043, 6
      %vm1061 = vcmask 1042434
      %v1062 = vsel %vm1061, %v1060, %v1059
      %v1063 = vrot.slane %v1044, 5
      %vm1064 = vcmask 1043459
      %v1065 = vsel %vm1064, %v1063, %v1062
      %v1066 = vrot.slane %v1045, 4
      %vm1067 = vcmask 1044484
      %v1068 = vsel %vm1067, %v1066, %v1065
      %v1069 = vrot.slane %v1046, 3
      %vm1070 = vcmask 1045509
      %v1071 = vsel %vm1070, %v1069, %v1068
      %v1072 = vrot.slane %v1047, 2
      %vm1073 = vcmask 1046534
      %v1074 = vsel %vm1073, %v1072, %v1071
      %v1075 = vrot.slane %v1048, 1
      %vm1076 = vcmask 1047559
      %v1077 = vsel %vm1076, %v1075, %v1074
      %1079 = vst.msk [vmem:[#allocation4] sm:$0xff] %vm47, %v1077
      %v1080 = vld [vmem:[#allocation3 + $0x1] sm:$0x1]
      %v1081 = vld [vmem:[#allocation3 + $0x9] sm:$0x1]
      %v1082 = vld [vmem:[#allocation3 + $0x11] sm:$0x1]
      %v1083 = vld [vmem:[#allocation3 + $0x19] sm:$0x1]
      %v1084 = vld [vmem:[#allocation3 + $0x21] sm:$0x1]
      %v1085 = vld [vmem:[#allocation3 + $0x29] sm:$0x1]
      %v1086 = vld [vmem:[#allocation3 + $0x31] sm:$0x1]
      %v1087 = vld [vmem:[#allocation3 + $0x39] sm:$0x1]
      %v1096 = vrot.slane %v1081, 7
      %v1097 = vsel %vm1058, %v1096, %v1080
      %v1098 = vrot.slane %v1082, 6
      %v1099 = vsel %vm1061, %v1098, %v1097
      %v1100 = vrot.slane %v1083, 5
      %v1101 = vsel %vm1064, %v1100, %v1099
      %v1102 = vrot.slane %v1084, 4
      %v1103 = vsel %vm1067, %v1102, %v1101
      %v1104 = vrot.slane %v1085, 3
      %v1105 = vsel %vm1070, %v1104, %v1103
      %v1106 = vrot.slane %v1086, 2
      %v1107 = vsel %vm1073, %v1106, %v1105
      %v1108 = vrot.slane %v1087, 1
      %v1109 = vsel %vm1076, %v1108, %v1107
      %1111 = vst.msk [vmem:[#allocation4 + $0x8] sm:$0xff] %vm47, %v1109
      %v1112 = vld [vmem:[#allocation3 + $0x2] sm:$0x1]
      %v1113 = vld [vmem:[#allocation3 + $0xa] sm:$0x1]
      %v1114 = vld [vmem:[#allocation3 + $0x12] sm:$0x1]
      %v1115 = vld [vmem:[#allocation3 + $0x1a] sm:$0x1]
      %v1116 = vld [vmem:[#allocation3 + $0x22] sm:$0x1]
      %v1117 = vld [vmem:[#allocation3 + $0x2a] sm:$0x1]
      %v1118 = vld [vmem:[#allocation3 + $0x32] sm:$0x1]
      %v1119 = vld [vmem:[#allocation3 + $0x3a] sm:$0x1]
      %v1128 = vrot.slane %v1113, 7
      %v1129 = vsel %vm1058, %v1128, %v1112
      %v1130 = vrot.slane %v1114, 6
      %v1131 = vsel %vm1061, %v1130, %v1129
      %v1132 = vrot.slane %v1115, 5
      %v1133 = vsel %vm1064, %v1132, %v1131
      %v1134 = vrot.slane %v1116, 4
      %v1135 = vsel %vm1067, %v1134, %v1133
      %v1136 = vrot.slane %v1117, 3
      %v1137 = vsel %vm1070, %v1136, %v1135
      %v1138 = vrot.slane %v1118, 2
      %v1139 = vsel %vm1073, %v1138, %v1137
      %v1140 = vrot.slane %v1119, 1
      %v1141 = vsel %vm1076, %v1140, %v1139
      %1143 = vst.msk [vmem:[#allocation4 + $0x10] sm:$0xff] %vm47, %v1141
      %v1144 = vld [vmem:[#allocation3 + $0x3] sm:$0x1]
      %v1145 = vld [vmem:[#allocation3 + $0xb] sm:$0x1]
      %v1146 = vld [vmem:[#allocation3 + $0x13] sm:$0x1]
      %v1147 = vld [vmem:[#allocation3 + $0x1b] sm:$0x1]
      %v1148 = vld [vmem:[#allocation3 + $0x23] sm:$0x1]
      %v1149 = vld [vmem:[#allocation3 + $0x2b] sm:$0x1]
      %v1150 = vld [vmem:[#allocation3 + $0x33] sm:$0x1]
      %v1151 = vld [vmem:[#allocation3 + $0x3b] sm:$0x1]
      %v1160 = vrot.slane %v1145, 7
      %v1161 = vsel %vm1058, %v1160, %v1144
      %v1162 = vrot.slane %v1146, 6
      %v1163 = vsel %vm1061, %v1162, %v1161
      %v1164 = vrot.slane %v1147, 5
      %v1165 = vsel %vm1064, %v1164, %v1163
      %v1166 = vrot.slane %v1148, 4
      %v1167 = vsel %vm1067, %v1166, %v1165
      %v1168 = vrot.slane %v1149, 3
      %v1169 = vsel %vm1070, %v1168, %v1167
      %v1170 = vrot.slane %v1150, 2
      %v1171 = vsel %vm1073, %v1170, %v1169
      %v1172 = vrot.slane %v1151, 1
      %v1173 = vsel %vm1076, %v1172, %v1171
      %1175 = vst.msk [vmem:[#allocation4 + $0x18] sm:$0xff] %vm47, %v1173
      %v1176 = vld [vmem:[#allocation3 + $0x4] sm:$0x1]
      %v1177 = vld [vmem:[#allocation3 + $0xc] sm:$0x1]
      %v1178 = vld [vmem:[#allocation3 + $0x14] sm:$0x1]
      %v1179 = vld [vmem:[#allocation3 + $0x1c] sm:$0x1]
      %v1180 = vld [vmem:[#allocation3 + $0x24] sm:$0x1]
      %v1181 = vld [vmem:[#allocation3 + $0x2c] sm:$0x1]
      %v1182 = vld [vmem:[#allocation3 + $0x34] sm:$0x1]
      %v1183 = vld [vmem:[#allocation3 + $0x3c] sm:$0x1]
      %v1192 = vrot.slane %v1177, 7
      %v1193 = vsel %vm1058, %v1192, %v1176
      %v1194 = vrot.slane %v1178, 6
      %v1195 = vsel %vm1061, %v1194, %v1193
      %v1196 = vrot.slane %v1179, 5
      %v1197 = vsel %vm1064, %v1196, %v1195
      %v1198 = vrot.slane %v1180, 4
      %v1199 = vsel %vm1067, %v1198, %v1197
      %v1200 = vrot.slane %v1181, 3
      %v1201 = vsel %vm1070, %v1200, %v1199
      %v1202 = vrot.slane %v1182, 2
      %v1203 = vsel %vm1073, %v1202, %v1201
      %v1204 = vrot.slane %v1183, 1
      %v1205 = vsel %vm1076, %v1204, %v1203
      %1207 = vst.msk [vmem:[#allocation4 + $0x20] sm:$0xff] %vm47, %v1205
      %v1208 = vld [vmem:[#allocation3 + $0x5] sm:$0x1]
      %v1209 = vld [vmem:[#allocation3 + $0xd] sm:$0x1]
      %v1210 = vld [vmem:[#allocation3 + $0x15] sm:$0x1]
      %v1211 = vld [vmem:[#allocation3 + $0x1d] sm:$0x1]
      %v1212 = vld [vmem:[#allocation3 + $0x25] sm:$0x1]
      %v1213 = vld [vmem:[#allocation3 + $0x2d] sm:$0x1]
      %v1214 = vld [vmem:[#allocation3 + $0x35] sm:$0x1]
      %v1215 = vld [vmem:[#allocation3 + $0x3d] sm:$0x1]
      %v1224 = vrot.slane %v1209, 7
      %v1225 = vsel %vm1058, %v1224, %v1208
      %v1226 = vrot.slane %v1210, 6
      %v1227 = vsel %vm1061, %v1226, %v1225
      %v1228 = vrot.slane %v1211, 5
      %v1229 = vsel %vm1064, %v1228, %v1227
      %v1230 = vrot.slane %v1212, 4
      %v1231 = vsel %vm1067, %v1230, %v1229
      %v1232 = vrot.slane %v1213, 3
      %v1233 = vsel %vm1070, %v1232, %v1231
      %v1234 = vrot.slane %v1214, 2
      %v1235 = vsel %vm1073, %v1234, %v1233
      %v1236 = vrot.slane %v1215, 1
      %v1237 = vsel %vm1076, %v1236, %v1235
      %1239 = vst.msk [vmem:[#allocation4 + $0x28] sm:$0xff] %vm47, %v1237
      %v1240 = vld [vmem:[#allocation3 + $0x6] sm:$0x1]
      %v1241 = vld [vmem:[#allocation3 + $0xe] sm:$0x1]
      %v1242 = vld [vmem:[#allocation3 + $0x16] sm:$0x1]
      %v1243 = vld [vmem:[#allocation3 + $0x1e] sm:$0x1]
      %v1244 = vld [vmem:[#allocation3 + $0x26] sm:$0x1]
      %v1245 = vld [vmem:[#allocation3 + $0x2e] sm:$0x1]
      %v1246 = vld [vmem:[#allocation3 + $0x36] sm:$0x1]
      %v1247 = vld [vmem:[#allocation3 + $0x3e] sm:$0x1]
      %v1256 = vrot.slane %v1241, 7
      %v1257 = vsel %vm1058, %v1256, %v1240
      %v1258 = vrot.slane %v1242, 6
      %v1259 = vsel %vm1061, %v1258, %v1257
      %v1260 = vrot.slane %v1243, 5
      %v1261 = vsel %vm1064, %v1260, %v1259
      %v1262 = vrot.slane %v1244, 4
      %v1263 = vsel %vm1067, %v1262, %v1261
      %v1264 = vrot.slane %v1245, 3
      %v1265 = vsel %vm1070, %v1264, %v1263
      %v1266 = vrot.slane %v1246, 2
      %v1267 = vsel %vm1073, %v1266, %v1265
      %v1268 = vrot.slane %v1247, 1
      %v1269 = vsel %vm1076, %v1268, %v1267
      %1271 = vst.msk [vmem:[#allocation4 + $0x30] sm:$0xff] %vm47, %v1269
      %v1272 = vld [vmem:[#allocation3 + $0x7] sm:$0x1]
      %v1273 = vld [vmem:[#allocation3 + $0xf] sm:$0x1]
      %v1274 = vld [vmem:[#allocation3 + $0x17] sm:$0x1]
      %v1275 = vld [vmem:[#allocation3 + $0x1f] sm:$0x1]
      %v1276 = vld [vmem:[#allocation3 + $0x27] sm:$0x1]
      %v1277 = vld [vmem:[#allocation3 + $0x2f] sm:$0x1]
      %v1278 = vld [vmem:[#allocation3 + $0x37] sm:$0x1]
      %v1279 = vld [vmem:[#allocation3 + $0x3f] sm:$0x1]
      %v1288 = vrot.slane %v1273, 7
      %v1289 = vsel %vm1058, %v1288, %v1272
      %v1290 = vrot.slane %v1274, 6
      %v1291 = vsel %vm1061, %v1290, %v1289
      %v1292 = vrot.slane %v1275, 5
      %v1293 = vsel %vm1064, %v1292, %v1291
      %v1294 = vrot.slane %v1276, 4
      %v1295 = vsel %vm1067, %v1294, %v1293
      %v1296 = vrot.slane %v1277, 3
      %v1297 = vsel %vm1070, %v1296, %v1295
      %v1298 = vrot.slane %v1278, 2
      %v1299 = vsel %vm1073, %v1298, %v1297
      %v1300 = vrot.slane %v1279, 1
      %v1301 = vsel %vm1076, %v1300, %v1299
      %1303 = vst.msk [vmem:[#allocation4 + $0x38] sm:$0xff] %vm47, %v1301
    $region29: #{tpu_custom_call.1} parent=1 // pred_fallthru
      _
    %v1304 = vld [vmem:[#allocation4] sm:$0xff]
    %v1305 = vld [vmem:[#allocation4 + $0x8] sm:$0xff]
    %v1306 = vld [vmem:[#allocation4 + $0x10] sm:$0xff]
    %v1307 = vld [vmem:[#allocation4 + $0x18] sm:$0xff]
    %v1308 = vld [vmem:[#allocation4 + $0x20] sm:$0xff]
    %v1309 = vld [vmem:[#allocation4 + $0x28] sm:$0xff]
    %v1310 = vld [vmem:[#allocation4 + $0x30] sm:$0xff]
    %v1311 = vld [vmem:[#allocation4 + $0x38] sm:$0xff]
    %v1312 = vld [vmem:[%s4] sm:$0xff]
    %v1313 = vld [vmem:[%s4 + $0x8] sm:$0xff]
    %v1314 = vld [vmem:[%s4 + $0x10] sm:$0xff]
    %v1315 = vld [vmem:[%s4 + $0x18] sm:$0xff]
    %v1316 = vld [vmem:[%s5] sm:$0x1]
    %v1318 = vlaneseq
    %v1319 = vshrl.u32 %v1318, 7
    %v1320 = vsub.s32 0, %v1319
    %v1321 = vrot.slane %v1316, %v1320
    %vm1323 = vcmask 261120
    %v1325 = vsel %vm1323, %v1304, 0
    %v1328 = vsel %vm1323, %v1305, 0
    %v1331 = vsel %vm1323, %v1306, 0
    %v1334 = vsel %vm1323, %v1307, 0
    %v1337 = vsel %vm1323, %v1308, 0
    %v1340 = vsel %vm1323, %v1309, 0
    %v1343 = vsel %vm1323, %v1310, 0
    %v1346 = vsel %vm1323, %v1311, 0
    %1348 = vmatprep.subr.mxu0 0.0
    %1349 = vmatpush1.msra.mxu0 %v1312
    %1350 = vmatprep.subr.mxu0 0.0
    %1351 = vmatpush1.msra.mxu0 %v1313
    %1352 = vmatprep.subr.mxu0 0.0
    %1353 = vmatpush1.msra.mxu0 %v1314
    %1354 = vmatprep.subr.mxu0 0.0
    %1355 = vmatpush1.msra.mxu0 %v1315
    %1356 = vmatprep.subr.mxu0 0.0
    %1357 = vmatpush1.msra.mxu0 0.0
    %1358 = vmatprep.subr.mxu0 0.0
    %1359 = vmatpush1.msra.mxu0 0.0
    %1360 = vmatprep.subr.mxu0 0.0
    %1361 = vmatpush1.msra.mxu0 0.0
    %1362 = vmatprep.subr.mxu0 0.0
    %1363 = vmatpush1.msra.mxu0 0.0
    %1364 = vmatprep.subr.mxu0 0.0
    %1365 = vmatpush1.msra.mxu0 0.0
    %1366 = vmatprep.subr.mxu0 0.0
    %1367 = vmatpush1.msra.mxu0 0.0
    %1368 = vmatprep.subr.mxu0 0.0
    %1369 = vmatpush1.msra.mxu0 0.0
    %1370 = vmatprep.subr.mxu0 0.0
    %1371 = vmatpush1.msra.mxu0 0.0
    %1372 = vmatprep.subr.mxu0 0.0
    %1373 = vmatpush1.msra.mxu0 0.0
    %1374 = vmatprep.subr.mxu0 0.0
    %1375 = vmatpush1.msra.mxu0 0.0
    %1376 = vmatprep.subr.mxu0 0.0
    %1377 = vmatpush1.msra.mxu0 0.0
    %1378 = vmatprep.subr.mxu0 0.0
    %1379 = vmatpush1.msra.mxu0 0.0
    %1380 = vmatprep.subr.mxu0 0.0
    %1381 = vmatpush1.msra.mxu0 0.0
    %1382 = vmatprep.subr.mxu0 0.0
    %1383 = vmatpush1.msra.mxu0 0.0
    %1384 = vmatprep.subr.mxu0 0.0
    %1385 = vmatpush1.msra.mxu0 0.0
    %1386 = vmatprep.subr.mxu0 0.0
    %1387 = vmatpush1.msra.mxu0 0.0
    %1388 = vmatprep.subr.mxu0 0.0
    %1389 = vmatpush1.msra.mxu0 0.0
    %1390 = vmatprep.subr.mxu0 0.0
    %1391 = vmatpush1.msra.mxu0 0.0
    %1392 = vmatprep.subr.mxu0 0.0
    %1393 = vmatpush1.msra.mxu0 0.0
    %1394 = vmatprep.subr.mxu0 0.0
    %1395 = vmatpush1.msra.mxu0 0.0
    %1396 = vmatprep.subr.mxu0 0.0
    %1397 = vmatpush1.msra.mxu0 0.0
    %1398 = vmatprep.subr.mxu0 0.0
    %1399 = vmatpush1.msra.mxu0 0.0
    %1400 = vmatprep.subr.mxu0 0.0
    %1401 = vmatpush1.msra.mxu0 0.0
    %1402 = vmatprep.subr.mxu0 0.0
    %1403 = vmatpush1.msra.mxu0 0.0
    %1404 = vmatprep.subr.mxu0 0.0
    %1405 = vmatpush1.msra.mxu0 0.0
    %1406 = vmatprep.subr.mxu0 0.0
    %1407 = vmatpush1.msra.mxu0 0.0
    %1408 = vmatprep.subr.mxu0 0.0
    %1409 = vmatpush1.msra.mxu0 0.0
    %1410 = vmatprep.subr.mxu0 0.0
    %1411 = vmatpush1.msra.mxu0 0.0
    %1412 = vmatprep.mubr.f32.mxu0 0.0
    %1413 = vmatmul.mubr.f32.gmra.mrb[0].mxu0 %v1325
    %v1414 = vpop.f32.mrb[0].mxu0
    %v1415 = vadd.f32 %v1321, %v1414
    %v1416 = vpop.f32.mrb[0].mxu0
    %1417 = vmatprep.mubr.f32.mxu0 0.0
    %1418 = vmatmul.mubr.f32.gmra.mrb[0].mxu0 %v1328
    %v1419 = vpop.f32.mrb[0].mxu0
    %v1420 = vadd.f32 %v1321, %v1419
    %v1421 = vpop.f32.mrb[0].mxu0
    %1422 = vmatprep.mubr.f32.mxu0 0.0
    %1423 = vmatmul.mubr.f32.gmra.mrb[0].mxu0 %v1331
    %v1424 = vpop.f32.mrb[0].mxu0
    %v1425 = vadd.f32 %v1321, %v1424
    %v1426 = vpop.f32.mrb[0].mxu0
    %1427 = vmatprep.mubr.f32.mxu0 0.0
    %1428 = vmatmul.mubr.f32.gmra.mrb[0].mxu0 %v1334
    %v1429 = vpop.f32.mrb[0].mxu0
    %v1430 = vadd.f32 %v1321, %v1429
    %v1431 = vpop.f32.mrb[0].mxu0
    %1432 = vmatprep.mubr.f32.mxu0 0.0
    %1433 = vmatmul.mubr.f32.gmra.mrb[0].mxu0 %v1337
    %v1434 = vpop.f32.mrb[0].mxu0
    %v1435 = vadd.f32 %v1321, %v1434
    %v1436 = vpop.f32.mrb[0].mxu0
    %1437 = vmatprep.mubr.f32.mxu0 0.0
    %1438 = vmatmul.mubr.f32.gmra.mrb[0].mxu0 %v1340
    %v1439 = vpop.f32.mrb[0].mxu0
    %v1440 = vadd.f32 %v1321, %v1439
    %v1441 = vpop.f32.mrb[0].mxu0
    %1442 = vmatprep.mubr.f32.mxu0 0.0
    %1443 = vmatmul.mubr.f32.gmra.mrb[0].mxu0 %v1343
    %v1444 = vpop.f32.mrb[0].mxu0
    %v1445 = vadd.f32 %v1321, %v1444
    %v1446 = vpop.f32.mrb[0].mxu0
    %1447 = vmatprep.mubr.f32.mxu0 0.0
    %1448 = vmatmul.mubr.f32.gmra.mrb[0].mxu0 %v1346
    %v1449 = vpop.f32.mrb[0].mxu0
    %v1450 = vadd.f32 %v1321, %v1449
    %v1451 = vpop.f32.mrb[0].mxu0
    %1452 = vdwg.mxu0
    %1453 = vst [vmem:[#allocation5] sm:$0xff] %v1415
    %1454 = vst [vmem:[#allocation5 + $0x8] sm:$0xff] %v1420
    %1455 = vst [vmem:[#allocation5 + $0x10] sm:$0xff] %v1425
    %1456 = vst [vmem:[#allocation5 + $0x18] sm:$0xff] %v1430
    %1457 = vst [vmem:[#allocation5 + $0x20] sm:$0xff] %v1435
    %1458 = vst [vmem:[#allocation5 + $0x28] sm:$0xff] %v1440
    %1459 = vst [vmem:[#allocation5 + $0x30] sm:$0xff] %v1445
    %1460 = vst [vmem:[#allocation5 + $0x38] sm:$0xff] %v1450
    // Predicated region
    $region30: #{tpu_custom_call.1} parent=1 // pred_check
      _
    $region31: #{tpu_custom_call.1} parent=1 // pred_check_branch
      %1462 = sbr.rel (0) target = $region33
    $region32: #{tpu_custom_call.1} parent=1 // pred_region
      %s1464 = ssub.s32 1024, 1024
      %1465 = vsyncadd [#allocation6], %s1464
      %s1466 = sshll.u32 [#allocation5], 4
      %s1467 = int_to_ptr.vmem [resolvable:$true] %s1466
      %1472 = dma.vmem_to_hbm [thread:$0]  %s1467, 1024, %s6, [#allocation6], 128, 128, 8
    $region33: #{tpu_custom_call.1} parent=1 // pred_fallthru
      _
    // Predicated region
    $region34: #{tpu_custom_call.1} parent=1 // pred_check
      _
    $region35: #{tpu_custom_call.1} parent=1 // pred_check_branch
      %1474 = sbr.rel (0) target = $region37
    $region36: #{tpu_custom_call.1} parent=1 // pred_region
      %1475 = dma.done [#allocation6], 1024
    $region37: #{tpu_custom_call.1} parent=1 // pred_fallthru
      _
    %1476 = vsyncpa [#allocation6], 1

</llo_original>
